<compile_context>
chip_gen: v7x
topology: tpu7x:2x2x1
jax: 0.10.0
libtpu: 0.0.40
codegen_flags: <defaults>
</compile_context>

<pallas_src>
import functools
import math

import jax
import jax.numpy as jnp
from jax import lax
from jax.experimental import pallas as pl
from jax.experimental.pallas import tpu as pltpu


def _round_up(x, m):
    return ((x + m - 1) // m) * m


def _cdiv(a, b):
    return -(-a // b)


def _physical_vmem_bytes():
    """Physical VMEM of the local TPU generation (64 MiB v7x, 128 MiB v5e/v6e)."""
    try:
        return int(pltpu.get_tpu_info().vmem_capacity_bytes)
    except Exception:
        return 64 << 20  # conservative fallback (v7x per-core VMEM)


# ---------------------------------------------------------------------------
# In-kernel building blocks.
# ---------------------------------------------------------------------------

def _flash_step(qs_sc, k_ref, v_ref, m_sc, l_sc, acc_sc, *, num_heads, head_dim,
                mask=None, keep_v_rows=None, guard_all_masked=False):
    """Online-softmax update for one kv tile.

    qs_sc:       [TQ, H*D]  pre-scaled Q (VMEM scratch, MXU operand dtype)
    k_ref/v_ref: [TKV, H*D] current kv tile
    m_sc/l_sc:   [H, TQ, 1] f32 running max / sum
    acc_sc:      [TQ, H*D]  f32 lane-dense output accumulator
    mask:        None or [TQ|1, TKV] bool (True = keep)
    keep_v_rows: None or [TKV, 1] bool; False rows of V are zeroed (scrubs the
                 garbage read past the end of S so 0*NaN cannot hit the MXU)
    guard_all_masked: protect rows whose keys are all masked so far (only
                 needed when a user kv_mask can blank an entire row).
    """
    # TODO(synk): for num_heads > ~8, switch this static unroll to lax.fori_loop
    # with pl.ds(h*D, D) slices to bound vreg live ranges.
    # TODO(synk): for head_dim >= 128, a per-head grid axis with (TQ, D) blocks
    # beats in-kernel lane slicing.
    for h in range(num_heads):
        lo, hi = h * head_dim, (h + 1) * head_dim
        q_h = qs_sc[:, lo:hi]                    # [TQ, D], already * 1/sqrt(D)
        k_h = k_ref[:, lo:hi]                    # [TKV, D]
        v_h = v_ref[:, lo:hi]                    # [TKV, D]
        if keep_v_rows is not None:
            v_h = jnp.where(keep_v_rows, v_h, jnp.zeros_like(v_h))

        # Q @ K^T without materializing K^T: contract the last dim of both.
        s = lax.dot_general(q_h, k_h, (((1,), (1,)), ((), ())),
                            preferred_element_type=jnp.float32)   # [TQ, TKV]
        if mask is not None:
            s = jnp.where(mask, s, -jnp.inf)

        m_prev = m_sc[h]                                            # [TQ, 1]
        m_new = jnp.maximum(m_prev, jnp.max(s, axis=-1, keepdims=True))
        if guard_all_masked:
            # Avoid exp(-inf - (-inf)) = NaN for rows fully masked so far.
            m_piv = jnp.where(m_new == -jnp.inf, jnp.zeros_like(m_new), m_new)
        else:
            m_piv = m_new
        alpha = jnp.exp(m_prev - m_piv)                             # [TQ, 1]
        p = jnp.exp(s - m_piv)                                      # [TQ, TKV] f32

        l_sc[h] = alpha * l_sc[h] + jnp.sum(p, axis=-1, keepdims=True)
        acc_sc[:, lo:hi] = alpha * acc_sc[:, lo:hi] + jnp.dot(
            p.astype(v_h.dtype), v_h, preferred_element_type=jnp.float32)
        m_sc[h] = m_new


def _init_state(q_ref, qs_sc, m_sc, l_sc, acc_sc, scale):
    # q*scale hoisted out of the kv loop: written once per query tile.
    qs_sc[...] = q_ref[...] * scale
    m_sc[...] = jnp.full(m_sc.shape, -jnp.inf, dtype=m_sc.dtype)
    l_sc[...] = jnp.zeros(l_sc.shape, dtype=l_sc.dtype)
    acc_sc[...] = jnp.zeros(acc_sc.shape, dtype=acc_sc.dtype)


def _finalize(o_ref, l_sc, acc_sc, *, num_heads, head_dim):
    tq = acc_sc.shape[0]
    inv_parts = []
    for h in range(num_heads):
        l_h = l_sc[h]                                       # [TQ, 1]
        r = pl.reciprocal(l_h, approx=True)                 # EUP vrcp (free slot)
        r = r * (2.0 - l_h * r)                             # Newton step 1
        r = r * (2.0 - l_h * r)                             # Newton step 2 (~f32 exact)
        inv_parts.append(jnp.broadcast_to(r, (tq, head_dim)))
    inv = jnp.concatenate(inv_parts, axis=-1)               # [TQ, H*D]
    # Single lane-dense full-width store (no per-head partial-lane stores).
    o_ref[...] = (acc_sc[...] * inv).astype(o_ref.dtype)


def _attn_kernel(q_ref, k_ref, v_ref, o_ref, qs_sc, m_sc, l_sc, acc_sc, *,
                 scale, num_heads, head_dim, kv_tile, num_kv_tiles, last_rem):
    kv_idx = pl.program_id(2)

    @pl.when(kv_idx == 0)
    def _():
        _init_state(q_ref, qs_sc, m_sc, l_sc, acc_sc, scale)

    step = functools.partial(_flash_step, qs_sc, k_ref, v_ref, m_sc, l_sc,
                             acc_sc, num_heads=num_heads, head_dim=head_dim)

    if last_rem == kv_tile:
        # Every kv tile is fully in bounds: select-free fast path everywhere.
        step()
    else:
        @pl.when(kv_idx < num_kv_tiles - 1)
        def _():
            step()

        @pl.when(kv_idx == num_kv_tiles - 1)
        def _():
            # Only the last kv tile pays for the tail mask + garbage-V scrub.
            keep_col = lax.broadcasted_iota(jnp.int32, (1, kv_tile), 1) < last_rem
            keep_row = lax.broadcasted_iota(jnp.int32, (kv_tile, 1), 0) < last_rem
            step(mask=keep_col, keep_v_rows=keep_row)

    @pl.when(kv_idx == num_kv_tiles - 1)
    def _():
        _finalize(o_ref, l_sc, acc_sc, num_heads=num_heads, head_dim=head_dim)


def _attn_kernel_masked(qm_ref, kvm_ref, q_ref, k_ref, v_ref, o_ref,
                        qs_sc, m_sc, l_sc, acc_sc, *, scale, num_heads,
                        head_dim, kv_tile, num_kv_tiles, last_rem):
    kv_idx = pl.program_id(2)

    @pl.when(kv_idx == 0)
    def _():
        _init_state(q_ref, qs_sc, m_sc, l_sc, acc_sc, scale)

    # [TQ,1] & [1,TKV] -> [TQ,TKV]; no [N,L,S] mask is ever built in HBM.
    base_mask = (qm_ref[...] != 0) & (kvm_ref[...] != 0)
    # TODO(synk): scalar-prefetch per-(batch, kv-tile) all-valid / all-masked
    # flags to skip fully-masked tiles and drop the select on fully-valid ones.

    step = functools.partial(_flash_step, qs_sc, k_ref, v_ref, m_sc, l_sc,
                             acc_sc, num_heads=num_heads, head_dim=head_dim,
                             guard_all_masked=True)

    if last_rem == kv_tile:
        step(mask=base_mask)
    else:
        @pl.when(kv_idx < num_kv_tiles - 1)
        def _():
            step(mask=base_mask)

        @pl.when(kv_idx == num_kv_tiles - 1)
        def _():
            keep_col = lax.broadcasted_iota(jnp.int32, (1, kv_tile), 1) < last_rem
            keep_row = lax.broadcasted_iota(jnp.int32, (kv_tile, 1), 0) < last_rem
            step(mask=base_mask & keep_col, keep_v_rows=keep_row)

    @pl.when(kv_idx == num_kv_tiles - 1)
    def _():
        _finalize(o_ref, l_sc, acc_sc, num_heads=num_heads, head_dim=head_dim)


# ---------------------------------------------------------------------------
# Wrapper.
# ---------------------------------------------------------------------------

def full_attention(queries, keys, values, q_mask=None, kv_mask=None, *,
                   mxu_dtype=None, tq=None, tkv=None):
    """Pallas implementation of FullAttention.forward (use_dropout=False).

    queries: [N, L, H, D], keys/values: [N, S, H, D], q_mask: [N, L],
    kv_mask: [N, S].  Returns [N, L, H, D] in the queries dtype.

    mxu_dtype: optionally cast Q/K/V once to this dtype (e.g. jnp.bfloat16) so
      both matmuls run at the MXU's native rate and K/V bytes halve; softmax
      statistics stay f32.  None (default) keeps the input dtype.
    tq / tkv: optional tile overrides (tq: multiple of 8; tkv: multiple of 128
      or equal to S).

    Note: rows whose keys are entirely masked by kv_mask produce NaN, matching
    the softmax-over-all--inf behaviour of the reference module.
    """
    N, L, H, D = queries.shape
    S = keys.shape[1]
    HD = H * D
    scale = 1.0 / math.sqrt(D)
    out_dtype = queries.dtype

    # Free, contiguous reshapes -- no HBM transposes and no HBM padding copies.
    q3 = queries.reshape(N, L, HD)
    k3 = keys.reshape(N, S, HD)
    v3 = values.reshape(N, S, HD)
    if mxu_dtype is not None and q3.dtype != jnp.dtype(mxu_dtype):
        q3 = q3.astype(mxu_dtype)
        k3 = k3.astype(mxu_dtype)
        v3 = v3.astype(mxu_dtype)
    in_dtype = q3.dtype
    in_isize = jnp.dtype(in_dtype).itemsize
    out_isize = jnp.dtype(out_dtype).itemsize
    sub = {4: 8, 2: 16, 1: 32}.get(in_isize, 8)      # dtype-aware sublane tile

    has_mask = kv_mask is not None

    # ---- generation-aware tile sizing --------------------------------------
    phys_vmem = _physical_vmem_bytes()               # 64 MiB (v7x) / 128 MiB (v5e/v6e)
    budget = min(int(phys_vmem * 0.45), 96 << 20)    # headroom for Mosaic internals

    def footprint(tq_, tkv_):
        """Double-buffered block + scratch + matmul-intermediate bytes."""
        b = 2 * tq_ * HD * in_isize                  # Q block (x2 pipeline bufs)
        b += 2 * 2 * tkv_ * HD * in_isize            # K and V blocks
        b += 2 * tq_ * HD * out_isize                # output block
        if has_mask:
            b += 2 * (tq_ * 128 + 8 * max(tkv_, 128)) * 4   # qm / kvm blocks (padded)
        s = tq_ * HD * 4                             # f32 accumulator
        s += tq_ * HD * in_isize                     # pre-scaled Q scratch
        s += 2 * H * tq_ * 128 * 4                   # m, l (lane-padded to 128)
        s += 4 * tq_ * tkv_ * 4                      # per-head s/p f32 temporaries
        return b + s

    if tq is None:
        tq_full = _round_up(L, sub)
        if tq_full <= 512 and footprint(tq_full, 128) <= budget:
            tq = tq_full                             # single query tile: K/V streamed once
        else:
            tq = 128
            for cand in (512, 256):                  # bigger TQ => less K/V re-streaming
                if cand < tq_full and footprint(cand, 128) <= budget:
                    tq = cand
                    break
    # TODO(synk): on v7x (2 TensorCores) split a single-q-tile grid with N == 1
    # so both cores get work; needs reliable core-count detection to avoid
    # doubling K/V streaming on single-core chips.

    if tkv is None:
        if S <= 1024 and footprint(tq, S) <= budget:
            tkv = S                                  # single kv tile, no tail handling
        else:
            cands = [c for c in (128, 256, 512, 1024) if footprint(tq, c) <= budget]
            if not cands:
                cands = [128]
            # Minimize wasted tail compute (ceil(S/c)*c); prefer larger tiles on ties.
            tkv = min(cands, key=lambda c: (_cdiv(S, c) * c, -c))

    nq = _cdiv(L, tq)
    nk = _cdiv(S, tkv)
    last_rem = S - (nk - 1) * tkv                    # valid kv columns in the last tile
    grid = (N, nq, nk)

    vmem_limit = int(min(phys_vmem * 0.9,
                         max(32 << 20, 2 * footprint(tq, tkv) + (8 << 20))))

    qkv_specs = [
        pl.BlockSpec((None, tq, HD), lambda n, qi, ki: (n, qi, 0)),
        pl.BlockSpec((None, tkv, HD), lambda n, qi, ki: (n, ki, 0)),
        pl.BlockSpec((None, tkv, HD), lambda n, qi, ki: (n, ki, 0)),
    ]
    # TODO(synk): on v5e, consider pipeline_mode=pl.Buffered(3) on the K/V specs
    # if a profile shows exposed K/V DMA after tile enlargement.
    out_spec = pl.BlockSpec((None, tq, HD), lambda n, qi, ki: (n, qi, 0))
    out_shape = jax.ShapeDtypeStruct((N, L, HD), out_dtype)
    scratch = [
        pltpu.VMEM((tq, HD), in_dtype),       # pre-scaled Q (hoists q*scale)
        pltpu.VMEM((H, tq, 1), jnp.float32),  # running max m_i
        pltpu.VMEM((H, tq, 1), jnp.float32),  # running sum l_i
        pltpu.VMEM((tq, HD), jnp.float32),    # lane-dense output accumulator
    ]
    cparams = pltpu.CompilerParams(
        dimension_semantics=("parallel", "parallel", "arbitrary"),
        vmem_limit_bytes=vmem_limit)

    common = dict(scale=scale, num_heads=H, head_dim=D, kv_tile=tkv,
                  num_kv_tiles=nk, last_rem=last_rem)

    if not has_mask:
        out3 = pl.pallas_call(
            functools.partial(_attn_kernel, **common),
            out_shape=out_shape,
            grid=grid,
            in_specs=qkv_specs,
            out_specs=out_spec,
            scratch_shapes=scratch,
            compiler_params=cparams,
        )(q3, k3, v3)
    else:
        if q_mask is None:
            q_mask = jnp.ones((N, L), dtype=bool)
        qm = q_mask.astype(jnp.int32).reshape(N, L, 1)
        kvm = kv_mask.astype(jnp.int32).reshape(N, 1, S)
        mask_specs = [
            pl.BlockSpec((None, tq, 1), lambda n, qi, ki: (n, qi, 0)),
            pl.BlockSpec((None, 1, tkv), lambda n, qi, ki: (n, 0, ki)),
        ]
        out3 = pl.pallas_call(
            functools.partial(_attn_kernel_masked, **common),
            out_shape=out_shape,
            grid=grid,
            in_specs=mask_specs + qkv_specs,
            out_specs=out_spec,
            scratch_shapes=scratch,
            compiler_params=cparams,
        )(qm, kvm, q3, k3, v3)

    return out3.reshape(N, L, H, D)


def full_attention_ref(queries, keys, values, q_mask=None, kv_mask=None):
    """Plain-JAX reference mirroring the PyTorch forward exactly."""
    QK = jnp.einsum('nlhd,nshd->nlsh', queries, keys)
    if kv_mask is not None:
        m = q_mask[:, :, None, None] & kv_mask[:, None, :, None]
        QK = jnp.where(m, QK, -jnp.inf)
    temp = 1.0 / math.sqrt(queries.shape[3])
    A = jax.nn.softmax(temp * QK, axis=2)
    return jnp.einsum('nlsh,nshd->nlhd', A, values)


if __name__ == "__main__":
    root = jax.random.PRNGKey(0)
    kq, kk, kv, k2q, k2k, k2v = jax.random.split(root, 6)

    # --- small shapes consistent with the module: N=2, L=S=8, H=4, D=32 -----
    N, L, S, H, D = 2, 8, 8, 4, 32
    queries = jax.random.normal(kq, (N, L, H, D), dtype=jnp.float32)
    keys = jax.random.normal(kk, (N, S, H, D), dtype=jnp.float32)
    values = jax.random.normal(kv, (N, S, H, D), dtype=jnp.float32)

    # Unmasked path.
    out = jax.block_until_ready(full_attention(queries, keys, values))
    ref = full_attention_ref(queries, keys, values)
    assert out.shape == (N, L, H, D)
    assert jnp.allclose(out, ref, rtol=1e-4, atol=1e-5), "unmasked mismatch"

    # Masked path (every query row keeps at least one valid kv slot).
    q_mask = jnp.ones((N, L), dtype=bool)
    kv_mask = jnp.concatenate(
        [jnp.ones((N, S - 2), dtype=bool), jnp.zeros((N, 2), dtype=bool)], axis=1)
    out_m = jax.block_until_ready(
        full_attention(queries, keys, values, q_mask, kv_mask))
    ref_m = full_attention_ref(queries, keys, values, q_mask, kv_mask)
    assert jnp.allclose(out_m, ref_m, rtol=1e-4, atol=1e-5), "masked mismatch"

    # Non-divisible shapes, default tiling (single kv tile, zero HBM padding).
    N2, L2, S2, H2, D2 = 1, 40, 300, 2, 64
    q2 = jax.random.normal(k2q, (N2, L2, H2, D2), dtype=jnp.float32)
    kk2 = jax.random.normal(k2k, (N2, S2, H2, D2), dtype=jnp.float32)
    vv2 = jax.random.normal(k2v, (N2, S2, H2, D2), dtype=jnp.float32)
    ref2 = full_attention_ref(q2, kk2, vv2)
    out2 = jax.block_until_ready(full_attention(q2, kk2, vv2))
    assert jnp.allclose(out2, ref2, rtol=1e-4, atol=1e-5), "non-divisible mismatch"

    # Force multi-kv-tile tiling (tkv=128): exercises the multi-tile online
    # softmax and the pl.when-gated tail mask for S % tkv = 44.
    out2t = jax.block_until_ready(full_attention(q2, kk2, vv2, tkv=128))
    assert jnp.allclose(out2t, ref2, rtol=1e-4, atol=1e-5), "tiled tail mismatch"

    # Masked + multi-kv-tile + tail.
    q_mask2 = jnp.ones((N2, L2), dtype=bool)
    kv_mask2 = jnp.concatenate(
        [jnp.ones((N2, S2 - 20), dtype=bool), jnp.zeros((N2, 20), dtype=bool)],
        axis=1)
    ref2m = full_attention_ref(q2, kk2, vv2, q_mask2, kv_mask2)
    out2m = jax.block_until_ready(
        full_attention(q2, kk2, vv2, q_mask2, kv_mask2, tkv=128))
    assert jnp.allclose(out2m, ref2m, rtol=1e-4, atol=1e-5), "masked tiled mismatch"

    # bf16 MXU-operand mode (performance option): matmuls in bf16, stats in f32.
    # Looser tolerance by construction of the bf16 rounding.
    out_bf16 = jax.block_until_ready(
        full_attention(queries, keys, values, mxu_dtype=jnp.bfloat16))
    assert jnp.allclose(out_bf16, ref, rtol=1e-1, atol=1e-1), "bf16 mode mismatch"

    print("KERNEL_OK")
</pallas_src>

<mosaic_0001>
module attributes {stable_mosaic.version = 11 : i64} {
  func.func @_attn_kernel(%arg0: i32, %arg1: i32, %arg2: i32, %arg3: memref<1x8x128xf32, #tpu.memory_space<vmem>>, %arg4: memref<1x8x128xf32, #tpu.memory_space<vmem>>, %arg5: memref<1x8x128xf32, #tpu.memory_space<vmem>>, %arg6: memref<1x8x128xf32, #tpu.memory_space<vmem>>, %arg7: memref<8x128xf32, #tpu.memory_space<vmem>>, %arg8: memref<4x8x1xf32, #tpu.memory_space<vmem>>, %arg9: memref<4x8x1xf32, #tpu.memory_space<vmem>>, %arg10: memref<8x128xf32, #tpu.memory_space<vmem>>) attributes {dimension_semantics = [#tpu.dimension_semantics<parallel>, #tpu.dimension_semantics<parallel>, #tpu.dimension_semantics<arbitrary>], iteration_bounds = array<i64: 2, 1, 1>, scalar_prefetch = 0 : i64, scratch_operands = 4 : i64, tpu.core_type = #tpu.core_type<tc>, window_params = [{transform_indices = @transform_0, window_bounds = array<i64: 1, 8, 128>}, {transform_indices = @transform_1, window_bounds = array<i64: 1, 8, 128>}, {transform_indices = @transform_2, window_bounds = array<i64: 1, 8, 128>}, {transform_indices = @transform_3, window_bounds = array<i64: 1, 8, 128>}]} {
    %c0_i32 = arith.constant 0 : i32
    %0 = arith.cmpi eq, %arg2, %c0_i32 : i32
    %1 = arith.extui %0 : i1 to i32
    %c0_i32_0 = arith.constant 0 : i32
    %2 = arith.cmpi ne, %1, %c0_i32_0 : i32
    scf.if %2 {
      %c0_107 = arith.constant 0 : index
      %c0_108 = arith.constant 0 : index
      %c0_109 = arith.constant 0 : index
      %142 = vector.load %arg3[%c0_107, %c0_108, %c0_109] : memref<1x8x128xf32, #tpu.memory_space<vmem>>, vector<1x8x128xf32>
      %143 = vector.shape_cast %142 : vector<1x8x128xf32> to vector<8x128xf32>
      %cst_110 = arith.constant 0.176776692 : f32
      %144 = vector.broadcast %cst_110 : f32 to vector<8x128xf32>
      %145 = arith.mulf %143, %144 : vector<8x128xf32>
      %c0_111 = arith.constant 0 : index
      %c0_112 = arith.constant 0 : index
      %146 = vector.load %arg7[%c0_111, %c0_112] : memref<8x128xf32, #tpu.memory_space<vmem>>, vector<8x128xf32>
      tpu.vector_store %arg7[%c0_111, %c0_112], %145 {strides = array<i32>} : memref<8x128xf32, #tpu.memory_space<vmem>>, vector<8x128xf32>,
      %cst_113 = arith.constant 0xFF800000 : f32
      %147 = vector.broadcast %cst_113 : f32 to vector<4x8x1xf32>
      %c0_114 = arith.constant 0 : index
      %c0_115 = arith.constant 0 : index
      %c0_116 = arith.constant 0 : index
      %148 = vector.load %arg8[%c0_114, %c0_115, %c0_116] : memref<4x8x1xf32, #tpu.memory_space<vmem>>, vector<4x8x1xf32>
      tpu.vector_store %arg8[%c0_114, %c0_115, %c0_116], %147 {strides = array<i32>} : memref<4x8x1xf32, #tpu.memory_space<vmem>>, vector<4x8x1xf32>,
      %cst_117 = arith.constant 0.000000e+00 : f32
      %149 = vector.broadcast %cst_117 : f32 to vector<4x8x1xf32>
      %c0_118 = arith.constant 0 : index
      %c0_119 = arith.constant 0 : index
      %c0_120 = arith.constant 0 : index
      %150 = vector.load %arg9[%c0_118, %c0_119, %c0_120] : memref<4x8x1xf32, #tpu.memory_space<vmem>>, vector<4x8x1xf32>
      tpu.vector_store %arg9[%c0_118, %c0_119, %c0_120], %149 {strides = array<i32>} : memref<4x8x1xf32, #tpu.memory_space<vmem>>, vector<4x8x1xf32>,
      %cst_121 = arith.constant 0.000000e+00 : f32
      %151 = vector.broadcast %cst_121 : f32 to vector<8x128xf32>
      %c0_122 = arith.constant 0 : index
      %c0_123 = arith.constant 0 : index
      %152 = vector.load %arg10[%c0_122, %c0_123] : memref<8x128xf32, #tpu.memory_space<vmem>>, vector<8x128xf32>
      tpu.vector_store %arg10[%c0_122, %c0_123], %151 {strides = array<i32>} : memref<8x128xf32, #tpu.memory_space<vmem>>, vector<8x128xf32>,
    } else {
    }
    %c0 = arith.constant 0 : index
    %c0_1 = arith.constant 0 : index
    %3 = vector.load %arg7[%c0, %c0_1] : memref<8x128xf32, #tpu.memory_space<vmem>>, vector<8x32xf32>
    %c0_2 = arith.constant 0 : index
    %c0_3 = arith.constant 0 : index
    %c0_4 = arith.constant 0 : index
    %4 = vector.load %arg4[%c0_2, %c0_3, %c0_4] : memref<1x8x128xf32, #tpu.memory_space<vmem>>, vector<1x8x32xf32>
    %5 = vector.shape_cast %4 : vector<1x8x32xf32> to vector<8x32xf32>
    %c0_5 = arith.constant 0 : index
    %c0_6 = arith.constant 0 : index
    %c0_7 = arith.constant 0 : index
    %6 = vector.load %arg5[%c0_5, %c0_6, %c0_7] : memref<1x8x128xf32, #tpu.memory_space<vmem>>, vector<1x8x32xf32>
    %7 = vector.shape_cast %6 : vector<1x8x32xf32> to vector<8x32xf32>
    %cst = arith.constant dense<0.000000e+00> : vector<8x8xf32>
    %8 = tpu.matmul %3, %5, %cst {dimension_numbers = #tpu.dot_dimension_numbers<[1], [1], [0], [0], [0, 0, 1, 0], [], []>} : vector<8x32xf32>, vector<8x32xf32>, vector<8x8xf32> -> vector<8x8xf32>
    %c0_8 = arith.constant 0 : index
    %c0_9 = arith.constant 0 : index
    %c0_10 = arith.constant 0 : index
    %9 = vector.load %arg8[%c0_8, %c0_9, %c0_10] : memref<4x8x1xf32, #tpu.memory_space<vmem>>, vector<1x8x1xf32>
    %10 = vector.shape_cast %9 : vector<1x8x1xf32> to vector<8x1xf32>
    %cst_11 = arith.constant dense<0xFF800000> : vector<8xf32>
    %11 = vector.multi_reduction <maximumf>, %8, %cst_11 [1] : vector<8x8xf32> to vector<8xf32>
    %12 = vector.shape_cast %11 : vector<8xf32> to vector<8x1xf32>
    %13 = arith.maximumf %10, %12 : vector<8x1xf32>
    %14 = arith.subf %10, %13 : vector<8x1xf32>
    %15 = math.exp %14 : vector<8x1xf32>
    %16 = vector.broadcast %13 : vector<8x1xf32> to vector<8x8xf32>
    %17 = arith.subf %8, %16 : vector<8x8xf32>
    %18 = math.exp %17 : vector<8x8xf32>
    %c0_12 = arith.constant 0 : index
    %c0_13 = arith.constant 0 : index
    %c0_14 = arith.constant 0 : index
    %19 = vector.load %arg9[%c0_12, %c0_13, %c0_14] : memref<4x8x1xf32, #tpu.memory_space<vmem>>, vector<1x8x1xf32>
    %20 = vector.shape_cast %19 : vector<1x8x1xf32> to vector<8x1xf32>
    %21 = arith.mulf %15, %20 : vector<8x1xf32>
    %cst_15 = arith.constant dense<0.000000e+00> : vector<8xf32>
    %22 = vector.multi_reduction <add>, %18, %cst_15 [1] : vector<8x8xf32> to vector<8xf32>
    %23 = vector.shape_cast %22 : vector<8xf32> to vector<8x1xf32>
    %24 = arith.addf %21, %23 : vector<8x1xf32>
    %c0_16 = arith.constant 0 : index
    %c0_17 = arith.constant 0 : index
    %c0_18 = arith.constant 0 : index
    %25 = vector.load %arg9[%c0_16, %c0_17, %c0_18] : memref<4x8x1xf32, #tpu.memory_space<vmem>>, vector<1x8x1xf32>
    %26 = vector.shape_cast %25 : vector<1x8x1xf32> to vector<8x1xf32>
    %27 = vector.shape_cast %24 : vector<8x1xf32> to vector<1x8x1xf32>
    tpu.vector_store %arg9[%c0_16, %c0_17, %c0_18], %27 {strides = array<i32>} : memref<4x8x1xf32, #tpu.memory_space<vmem>>, vector<1x8x1xf32>,
    %c0_19 = arith.constant 0 : index
    %c0_20 = arith.constant 0 : index
    %28 = vector.load %arg10[%c0_19, %c0_20] : memref<8x128xf32, #tpu.memory_space<vmem>>, vector<8x32xf32>
    %29 = vector.broadcast %15 : vector<8x1xf32> to vector<8x32xf32>
    %30 = arith.mulf %29, %28 : vector<8x32xf32>
    %cst_21 = arith.constant dense<0.000000e+00> : vector<8x32xf32>
    %31 = tpu.matmul %18, %7, %cst_21 {dimension_numbers = #tpu.dot_dimension_numbers<[1], [0], [0], [1], [0, 0, 1, 1], [], []>} : vector<8x8xf32>, vector<8x32xf32>, vector<8x32xf32> -> vector<8x32xf32>
    %32 = arith.addf %30, %31 : vector<8x32xf32>
    %c0_22 = arith.constant 0 : index
    %c0_23 = arith.constant 0 : index
    %33 = vector.load %arg10[%c0_22, %c0_23] : memref<8x128xf32, #tpu.memory_space<vmem>>, vector<8x32xf32>
    tpu.vector_store %arg10[%c0_22, %c0_23], %32 {strides = array<i32>} : memref<8x128xf32, #tpu.memory_space<vmem>>, vector<8x32xf32>,
    %c0_24 = arith.constant 0 : index
    %c0_25 = arith.constant 0 : index
    %c0_26 = arith.constant 0 : index
    %34 = vector.load %arg8[%c0_24, %c0_25, %c0_26] : memref<4x8x1xf32, #tpu.memory_space<vmem>>, vector<1x8x1xf32>
    %35 = vector.shape_cast %34 : vector<1x8x1xf32> to vector<8x1xf32>
    %36 = vector.shape_cast %13 : vector<8x1xf32> to vector<1x8x1xf32>
    tpu.vector_store %arg8[%c0_24, %c0_25, %c0_26], %36 {strides = array<i32>} : memref<4x8x1xf32, #tpu.memory_space<vmem>>, vector<1x8x1xf32>,
    %c0_27 = arith.constant 0 : index
    %c32 = arith.constant 32 : index
    %37 = vector.load %arg7[%c0_27, %c32] : memref<8x128xf32, #tpu.memory_space<vmem>>, vector<8x32xf32>
    %c0_28 = arith.constant 0 : index
    %c0_29 = arith.constant 0 : index
    %c32_30 = arith.constant 32 : index
    %38 = vector.load %arg4[%c0_28, %c0_29, %c32_30] : memref<1x8x128xf32, #tpu.memory_space<vmem>>, vector<1x8x32xf32>
    %39 = vector.shape_cast %38 : vector<1x8x32xf32> to vector<8x32xf32>
    %c0_31 = arith.constant 0 : index
    %c0_32 = arith.constant 0 : index
    %c32_33 = arith.constant 32 : index
    %40 = vector.load %arg5[%c0_31, %c0_32, %c32_33] : memref<1x8x128xf32, #tpu.memory_space<vmem>>, vector<1x8x32xf32>
    %41 = vector.shape_cast %40 : vector<1x8x32xf32> to vector<8x32xf32>
    %cst_34 = arith.constant dense<0.000000e+00> : vector<8x8xf32>
    %42 = tpu.matmul %37, %39, %cst_34 {dimension_numbers = #tpu.dot_dimension_numbers<[1], [1], [0], [0], [0, 0, 1, 0], [], []>} : vector<8x32xf32>, vector<8x32xf32>, vector<8x8xf32> -> vector<8x8xf32>
    %c1 = arith.constant 1 : index
    %c0_35 = arith.constant 0 : index
    %c0_36 = arith.constant 0 : index
    %43 = vector.load %arg8[%c1, %c0_35, %c0_36] : memref<4x8x1xf32, #tpu.memory_space<vmem>>, vector<1x8x1xf32>
    %44 = vector.shape_cast %43 : vector<1x8x1xf32> to vector<8x1xf32>
    %cst_37 = arith.constant dense<0xFF800000> : vector<8xf32>
    %45 = vector.multi_reduction <maximumf>, %42, %cst_37 [1] : vector<8x8xf32> to vector<8xf32>
    %46 = vector.shape_cast %45 : vector<8xf32> to vector<8x1xf32>
    %47 = arith.maximumf %44, %46 : vector<8x1xf32>
    %48 = arith.subf %44, %47 : vector<8x1xf32>
    %49 = math.exp %48 : vector<8x1xf32>
    %50 = vector.broadcast %47 : vector<8x1xf32> to vector<8x8xf32>
    %51 = arith.subf %42, %50 : vector<8x8xf32>
    %52 = math.exp %51 : vector<8x8xf32>
    %c1_38 = arith.constant 1 : index
    %c0_39 = arith.constant 0 : index
    %c0_40 = arith.constant 0 : index
    %53 = vector.load %arg9[%c1_38, %c0_39, %c0_40] : memref<4x8x1xf32, #tpu.memory_space<vmem>>, vector<1x8x1xf32>
    %54 = vector.shape_cast %53 : vector<1x8x1xf32> to vector<8x1xf32>
    %55 = arith.mulf %49, %54 : vector<8x1xf32>
    %cst_41 = arith.constant dense<0.000000e+00> : vector<8xf32>
    %56 = vector.multi_reduction <add>, %52, %cst_41 [1] : vector<8x8xf32> to vector<8xf32>
    %57 = vector.shape_cast %56 : vector<8xf32> to vector<8x1xf32>
    %58 = arith.addf %55, %57 : vector<8x1xf32>
    %c1_42 = arith.constant 1 : index
    %c0_43 = arith.constant 0 : index
    %c0_44 = arith.constant 0 : index
    %59 = vector.load %arg9[%c1_42, %c0_43, %c0_44] : memref<4x8x1xf32, #tpu.memory_space<vmem>>, vector<1x8x1xf32>
    %60 = vector.shape_cast %59 : vector<1x8x1xf32> to vector<8x1xf32>
    %61 = vector.shape_cast %58 : vector<8x1xf32> to vector<1x8x1xf32>
    tpu.vector_store %arg9[%c1_42, %c0_43, %c0_44], %61 {strides = array<i32>} : memref<4x8x1xf32, #tpu.memory_space<vmem>>, vector<1x8x1xf32>,
    %c0_45 = arith.constant 0 : index
    %c32_46 = arith.constant 32 : index
    %62 = vector.load %arg10[%c0_45, %c32_46] : memref<8x128xf32, #tpu.memory_space<vmem>>, vector<8x32xf32>
    %63 = vector.broadcast %49 : vector<8x1xf32> to vector<8x32xf32>
    %64 = arith.mulf %63, %62 : vector<8x32xf32>
    %cst_47 = arith.constant dense<0.000000e+00> : vector<8x32xf32>
    %65 = tpu.matmul %52, %41, %cst_47 {dimension_numbers = #tpu.dot_dimension_numbers<[1], [0], [0], [1], [0, 0, 1, 1], [], []>} : vector<8x8xf32>, vector<8x32xf32>, vector<8x32xf32> -> vector<8x32xf32>
    %66 = arith.addf %64, %65 : vector<8x32xf32>
    %c0_48 = arith.constant 0 : index
    %c32_49 = arith.constant 32 : index
    %67 = vector.load %arg10[%c0_48, %c32_49] : memref<8x128xf32, #tpu.memory_space<vmem>>, vector<8x32xf32>
    tpu.vector_store %arg10[%c0_48, %c32_49], %66 {strides = array<i32>} : memref<8x128xf32, #tpu.memory_space<vmem>>, vector<8x32xf32>,
    %c1_50 = arith.constant 1 : index
    %c0_51 = arith.constant 0 : index
    %c0_52 = arith.constant 0 : index
    %68 = vector.load %arg8[%c1_50, %c0_51, %c0_52] : memref<4x8x1xf32, #tpu.memory_space<vmem>>, vector<1x8x1xf32>
    %69 = vector.shape_cast %68 : vector<1x8x1xf32> to vector<8x1xf32>
    %70 = vector.shape_cast %47 : vector<8x1xf32> to vector<1x8x1xf32>
    tpu.vector_store %arg8[%c1_50, %c0_51, %c0_52], %70 {strides = array<i32>} : memref<4x8x1xf32, #tpu.memory_space<vmem>>, vector<1x8x1xf32>,
    %c0_53 = arith.constant 0 : index
    %c64 = arith.constant 64 : index
    %71 = vector.load %arg7[%c0_53, %c64] : memref<8x128xf32, #tpu.memory_space<vmem>>, vector<8x32xf32>
    %c0_54 = arith.constant 0 : index
    %c0_55 = arith.constant 0 : index
    %c64_56 = arith.constant 64 : index
    %72 = vector.load %arg4[%c0_54, %c0_55, %c64_56] : memref<1x8x128xf32, #tpu.memory_space<vmem>>, vector<1x8x32xf32>
    %73 = vector.shape_cast %72 : vector<1x8x32xf32> to vector<8x32xf32>
    %c0_57 = arith.constant 0 : index
    %c0_58 = arith.constant 0 : index
    %c64_59 = arith.constant 64 : index
    %74 = vector.load %arg5[%c0_57, %c0_58, %c64_59] : memref<1x8x128xf32, #tpu.memory_space<vmem>>, vector<1x8x32xf32>
    %75 = vector.shape_cast %74 : vector<1x8x32xf32> to vector<8x32xf32>
    %cst_60 = arith.constant dense<0.000000e+00> : vector<8x8xf32>
    %76 = tpu.matmul %71, %73, %cst_60 {dimension_numbers = #tpu.dot_dimension_numbers<[1], [1], [0], [0], [0, 0, 1, 0], [], []>} : vector<8x32xf32>, vector<8x32xf32>, vector<8x8xf32> -> vector<8x8xf32>
    %c2 = arith.constant 2 : index
    %c0_61 = arith.constant 0 : index
    %c0_62 = arith.constant 0 : index
    %77 = vector.load %arg8[%c2, %c0_61, %c0_62] : memref<4x8x1xf32, #tpu.memory_space<vmem>>, vector<1x8x1xf32>
    %78 = vector.shape_cast %77 : vector<1x8x1xf32> to vector<8x1xf32>
    %cst_63 = arith.constant dense<0xFF800000> : vector<8xf32>
    %79 = vector.multi_reduction <maximumf>, %76, %cst_63 [1] : vector<8x8xf32> to vector<8xf32>
    %80 = vector.shape_cast %79 : vector<8xf32> to vector<8x1xf32>
    %81 = arith.maximumf %78, %80 : vector<8x1xf32>
    %82 = arith.subf %78, %81 : vector<8x1xf32>
    %83 = math.exp %82 : vector<8x1xf32>
    %84 = vector.broadcast %81 : vector<8x1xf32> to vector<8x8xf32>
    %85 = arith.subf %76, %84 : vector<8x8xf32>
    %86 = math.exp %85 : vector<8x8xf32>
    %c2_64 = arith.constant 2 : index
    %c0_65 = arith.constant 0 : index
    %c0_66 = arith.constant 0 : index
    %87 = vector.load %arg9[%c2_64, %c0_65, %c0_66] : memref<4x8x1xf32, #tpu.memory_space<vmem>>, vector<1x8x1xf32>
    %88 = vector.shape_cast %87 : vector<1x8x1xf32> to vector<8x1xf32>
    %89 = arith.mulf %83, %88 : vector<8x1xf32>
    %cst_67 = arith.constant dense<0.000000e+00> : vector<8xf32>
    %90 = vector.multi_reduction <add>, %86, %cst_67 [1] : vector<8x8xf32> to vector<8xf32>
    %91 = vector.shape_cast %90 : vector<8xf32> to vector<8x1xf32>
    %92 = arith.addf %89, %91 : vector<8x1xf32>
    %c2_68 = arith.constant 2 : index
    %c0_69 = arith.constant 0 : index
    %c0_70 = arith.constant 0 : index
    %93 = vector.load %arg9[%c2_68, %c0_69, %c0_70] : memref<4x8x1xf32, #tpu.memory_space<vmem>>, vector<1x8x1xf32>
    %94 = vector.shape_cast %93 : vector<1x8x1xf32> to vector<8x1xf32>
    %95 = vector.shape_cast %92 : vector<8x1xf32> to vector<1x8x1xf32>
    tpu.vector_store %arg9[%c2_68, %c0_69, %c0_70], %95 {strides = array<i32>} : memref<4x8x1xf32, #tpu.memory_space<vmem>>, vector<1x8x1xf32>,
    %c0_71 = arith.constant 0 : index
    %c64_72 = arith.constant 64 : index
    %96 = vector.load %arg10[%c0_71, %c64_72] : memref<8x128xf32, #tpu.memory_space<vmem>>, vector<8x32xf32>
    %97 = vector.broadcast %83 : vector<8x1xf32> to vector<8x32xf32>
    %98 = arith.mulf %97, %96 : vector<8x32xf32>
    %cst_73 = arith.constant dense<0.000000e+00> : vector<8x32xf32>
    %99 = tpu.matmul %86, %75, %cst_73 {dimension_numbers = #tpu.dot_dimension_numbers<[1], [0], [0], [1], [0, 0, 1, 1], [], []>} : vector<8x8xf32>, vector<8x32xf32>, vector<8x32xf32> -> vector<8x32xf32>
    %100 = arith.addf %98, %99 : vector<8x32xf32>
    %c0_74 = arith.constant 0 : index
    %c64_75 = arith.constant 64 : index
    %101 = vector.load %arg10[%c0_74, %c64_75] : memref<8x128xf32, #tpu.memory_space<vmem>>, vector<8x32xf32>
    tpu.vector_store %arg10[%c0_74, %c64_75], %100 {strides = array<i32>} : memref<8x128xf32, #tpu.memory_space<vmem>>, vector<8x32xf32>,
    %c2_76 = arith.constant 2 : index
    %c0_77 = arith.constant 0 : index
    %c0_78 = arith.constant 0 : index
    %102 = vector.load %arg8[%c2_76, %c0_77, %c0_78] : memref<4x8x1xf32, #tpu.memory_space<vmem>>, vector<1x8x1xf32>
    %103 = vector.shape_cast %102 : vector<1x8x1xf32> to vector<8x1xf32>
    %104 = vector.shape_cast %81 : vector<8x1xf32> to vector<1x8x1xf32>
    tpu.vector_store %arg8[%c2_76, %c0_77, %c0_78], %104 {strides = array<i32>} : memref<4x8x1xf32, #tpu.memory_space<vmem>>, vector<1x8x1xf32>,
    %c0_79 = arith.constant 0 : index
    %c96 = arith.constant 96 : index
    %105 = vector.load %arg7[%c0_79, %c96] : memref<8x128xf32, #tpu.memory_space<vmem>>, vector<8x32xf32>
    %c0_80 = arith.constant 0 : index
    %c0_81 = arith.constant 0 : index
    %c96_82 = arith.constant 96 : index
    %106 = vector.load %arg4[%c0_80, %c0_81, %c96_82] : memref<1x8x128xf32, #tpu.memory_space<vmem>>, vector<1x8x32xf32>
    %107 = vector.shape_cast %106 : vector<1x8x32xf32> to vector<8x32xf32>
    %c0_83 = arith.constant 0 : index
    %c0_84 = arith.constant 0 : index
    %c96_85 = arith.constant 96 : index
    %108 = vector.load %arg5[%c0_83, %c0_84, %c96_85] : memref<1x8x128xf32, #tpu.memory_space<vmem>>, vector<1x8x32xf32>
    %109 = vector.shape_cast %108 : vector<1x8x32xf32> to vector<8x32xf32>
    %cst_86 = arith.constant dense<0.000000e+00> : vector<8x8xf32>
    %110 = tpu.matmul %105, %107, %cst_86 {dimension_numbers = #tpu.dot_dimension_numbers<[1], [1], [0], [0], [0, 0, 1, 0], [], []>} : vector<8x32xf32>, vector<8x32xf32>, vector<8x8xf32> -> vector<8x8xf32>
    %c3 = arith.constant 3 : index
    %c0_87 = arith.constant 0 : index
    %c0_88 = arith.constant 0 : index
    %111 = vector.load %arg8[%c3, %c0_87, %c0_88] : memref<4x8x1xf32, #tpu.memory_space<vmem>>, vector<1x8x1xf32>
    %112 = vector.shape_cast %111 : vector<1x8x1xf32> to vector<8x1xf32>
    %cst_89 = arith.constant dense<0xFF800000> : vector<8xf32>
    %113 = vector.multi_reduction <maximumf>, %110, %cst_89 [1] : vector<8x8xf32> to vector<8xf32>
    %114 = vector.shape_cast %113 : vector<8xf32> to vector<8x1xf32>
    %115 = arith.maximumf %112, %114 : vector<8x1xf32>
    %116 = arith.subf %112, %115 : vector<8x1xf32>
    %117 = math.exp %116 : vector<8x1xf32>
    %118 = vector.broadcast %115 : vector<8x1xf32> to vector<8x8xf32>
    %119 = arith.subf %110, %118 : vector<8x8xf32>
    %120 = math.exp %119 : vector<8x8xf32>
    %c3_90 = arith.constant 3 : index
    %c0_91 = arith.constant 0 : index
    %c0_92 = arith.constant 0 : index
    %121 = vector.load %arg9[%c3_90, %c0_91, %c0_92] : memref<4x8x1xf32, #tpu.memory_space<vmem>>, vector<1x8x1xf32>
    %122 = vector.shape_cast %121 : vector<1x8x1xf32> to vector<8x1xf32>
    %123 = arith.mulf %117, %122 : vector<8x1xf32>
    %cst_93 = arith.constant dense<0.000000e+00> : vector<8xf32>
    %124 = vector.multi_reduction <add>, %120, %cst_93 [1] : vector<8x8xf32> to vector<8xf32>
    %125 = vector.shape_cast %124 : vector<8xf32> to vector<8x1xf32>
    %126 = arith.addf %123, %125 : vector<8x1xf32>
    %c3_94 = arith.constant 3 : index
    %c0_95 = arith.constant 0 : index
    %c0_96 = arith.constant 0 : index
    %127 = vector.load %arg9[%c3_94, %c0_95, %c0_96] : memref<4x8x1xf32, #tpu.memory_space<vmem>>, vector<1x8x1xf32>
    %128 = vector.shape_cast %127 : vector<1x8x1xf32> to vector<8x1xf32>
    %129 = vector.shape_cast %126 : vector<8x1xf32> to vector<1x8x1xf32>
    tpu.vector_store %arg9[%c3_94, %c0_95, %c0_96], %129 {strides = array<i32>} : memref<4x8x1xf32, #tpu.memory_space<vmem>>, vector<1x8x1xf32>,
    %c0_97 = arith.constant 0 : index
    %c96_98 = arith.constant 96 : index
    %130 = vector.load %arg10[%c0_97, %c96_98] : memref<8x128xf32, #tpu.memory_space<vmem>>, vector<8x32xf32>
    %131 = vector.broadcast %117 : vector<8x1xf32> to vector<8x32xf32>
    %132 = arith.mulf %131, %130 : vector<8x32xf32>
    %cst_99 = arith.constant dense<0.000000e+00> : vector<8x32xf32>
    %133 = tpu.matmul %120, %109, %cst_99 {dimension_numbers = #tpu.dot_dimension_numbers<[1], [0], [0], [1], [0, 0, 1, 1], [], []>} : vector<8x8xf32>, vector<8x32xf32>, vector<8x32xf32> -> vector<8x32xf32>
    %134 = arith.addf %132, %133 : vector<8x32xf32>
    %c0_100 = arith.constant 0 : index
    %c96_101 = arith.constant 96 : index
    %135 = vector.load %arg10[%c0_100, %c96_101] : memref<8x128xf32, #tpu.memory_space<vmem>>, vector<8x32xf32>
    tpu.vector_store %arg10[%c0_100, %c96_101], %134 {strides = array<i32>} : memref<8x128xf32, #tpu.memory_space<vmem>>, vector<8x32xf32>,
    %c3_102 = arith.constant 3 : index
    %c0_103 = arith.constant 0 : index
    %c0_104 = arith.constant 0 : index
    %136 = vector.load %arg8[%c3_102, %c0_103, %c0_104] : memref<4x8x1xf32, #tpu.memory_space<vmem>>, vector<1x8x1xf32>
    %137 = vector.shape_cast %136 : vector<1x8x1xf32> to vector<8x1xf32>
    %138 = vector.shape_cast %115 : vector<8x1xf32> to vector<1x8x1xf32>
    tpu.vector_store %arg8[%c3_102, %c0_103, %c0_104], %138 {strides = array<i32>} : memref<4x8x1xf32, #tpu.memory_space<vmem>>, vector<1x8x1xf32>,
    %c0_i32_105 = arith.constant 0 : i32
    %139 = arith.cmpi eq, %arg2, %c0_i32_105 : i32
    %140 = arith.extui %139 : i1 to i32
    %c0_i32_106 = arith.constant 0 : i32
    %141 = arith.cmpi ne, %140, %c0_i32_106 : i32
    scf.if %141 {
      %c0_107 = arith.constant 0 : index
      %c0_108 = arith.constant 0 : index
      %c0_109 = arith.constant 0 : index
      %142 = vector.load %arg9[%c0_107, %c0_108, %c0_109] : memref<4x8x1xf32, #tpu.memory_space<vmem>>, vector<1x8x1xf32>
      %143 = vector.shape_cast %142 : vector<1x8x1xf32> to vector<8x1xf32>
      %144 = tpu.reciprocal %143 {approx = true} : vector<8x1xf32> -> vector<8x1xf32>
      %145 = arith.mulf %143, %144 : vector<8x1xf32>
      %cst_110 = arith.constant 2.000000e+00 : f32
      %146 = vector.broadcast %cst_110 : f32 to vector<8x1xf32>
      %147 = arith.subf %146, %145 : vector<8x1xf32>
      %148 = arith.mulf %144, %147 : vector<8x1xf32>
      %149 = arith.mulf %143, %148 : vector<8x1xf32>
      %cst_111 = arith.constant 2.000000e+00 : f32
      %150 = vector.broadcast %cst_111 : f32 to vector<8x1xf32>
      %151 = arith.subf %150, %149 : vector<8x1xf32>
      %152 = arith.mulf %148, %151 : vector<8x1xf32>
      %153 = vector.shape_cast %152 : vector<8x1xf32> to vector<8x1xf32>
      %154 = vector.broadcast %153 : vector<8x1xf32> to vector<8x32xf32>
      %c1_112 = arith.constant 1 : index
      %c0_113 = arith.constant 0 : index
      %c0_114 = arith.constant 0 : index
      %155 = vector.load %arg9[%c1_112, %c0_113, %c0_114] : memref<4x8x1xf32, #tpu.memory_space<vmem>>, vector<1x8x1xf32>
      %156 = vector.shape_cast %155 : vector<1x8x1xf32> to vector<8x1xf32>
      %157 = tpu.reciprocal %156 {approx = true} : vector<8x1xf32> -> vector<8x1xf32>
      %158 = arith.mulf %156, %157 : vector<8x1xf32>
      %cst_115 = arith.constant 2.000000e+00 : f32
      %159 = vector.broadcast %cst_115 : f32 to vector<8x1xf32>
      %160 = arith.subf %159, %158 : vector<8x1xf32>
      %161 = arith.mulf %157, %160 : vector<8x1xf32>
      %162 = arith.mulf %156, %161 : vector<8x1xf32>
      %cst_116 = arith.constant 2.000000e+00 : f32
      %163 = vector.broadcast %cst_116 : f32 to vector<8x1xf32>
      %164 = arith.subf %163, %162 : vector<8x1xf32>
      %165 = arith.mulf %161, %164 : vector<8x1xf32>
      %166 = vector.shape_cast %165 : vector<8x1xf32> to vector<8x1xf32>
      %167 = vector.broadcast %166 : vector<8x1xf32> to vector<8x32xf32>
      %c2_117 = arith.constant 2 : index
      %c0_118 = arith.constant 0 : index
      %c0_119 = arith.constant 0 : index
      %168 = vector.load %arg9[%c2_117, %c0_118, %c0_119] : memref<4x8x1xf32, #tpu.memory_space<vmem>>, vector<1x8x1xf32>
      %169 = vector.shape_cast %168 : vector<1x8x1xf32> to vector<8x1xf32>
      %170 = tpu.reciprocal %169 {approx = true} : vector<8x1xf32> -> vector<8x1xf32>
      %171 = arith.mulf %169, %170 : vector<8x1xf32>
      %cst_120 = arith.constant 2.000000e+00 : f32
      %172 = vector.broadcast %cst_120 : f32 to vector<8x1xf32>
      %173 = arith.subf %172, %171 : vector<8x1xf32>
      %174 = arith.mulf %170, %173 : vector<8x1xf32>
      %175 = arith.mulf %169, %174 : vector<8x1xf32>
      %cst_121 = arith.constant 2.000000e+00 : f32
      %176 = vector.broadcast %cst_121 : f32 to vector<8x1xf32>
      %177 = arith.subf %176, %175 : vector<8x1xf32>
      %178 = arith.mulf %174, %177 : vector<8x1xf32>
      %179 = vector.shape_cast %178 : vector<8x1xf32> to vector<8x1xf32>
      %180 = vector.broadcast %179 : vector<8x1xf32> to vector<8x32xf32>
      %c3_122 = arith.constant 3 : index
      %c0_123 = arith.constant 0 : index
      %c0_124 = arith.constant 0 : index
      %181 = vector.load %arg9[%c3_122, %c0_123, %c0_124] : memref<4x8x1xf32, #tpu.memory_space<vmem>>, vector<1x8x1xf32>
      %182 = vector.shape_cast %181 : vector<1x8x1xf32> to vector<8x1xf32>
      %183 = tpu.reciprocal %182 {approx = true} : vector<8x1xf32> -> vector<8x1xf32>
      %184 = arith.mulf %182, %183 : vector<8x1xf32>
      %cst_125 = arith.constant 2.000000e+00 : f32
      %185 = vector.broadcast %cst_125 : f32 to vector<8x1xf32>
      %186 = arith.subf %185, %184 : vector<8x1xf32>
      %187 = arith.mulf %183, %186 : vector<8x1xf32>
      %188 = arith.mulf %182, %187 : vector<8x1xf32>
      %cst_126 = arith.constant 2.000000e+00 : f32
      %189 = vector.broadcast %cst_126 : f32 to vector<8x1xf32>
      %190 = arith.subf %189, %188 : vector<8x1xf32>
      %191 = arith.mulf %187, %190 : vector<8x1xf32>
      %192 = vector.shape_cast %191 : vector<8x1xf32> to vector<8x1xf32>
      %193 = vector.broadcast %192 : vector<8x1xf32> to vector<8x32xf32>
      %194 = tpu.concatenate %154, %167, %180, %193 in 1 : vector<8x32xf32>, vector<8x32xf32>, vector<8x32xf32>, vector<8x32xf32> -> vector<8x128xf32>
      %c0_127 = arith.constant 0 : index
      %c0_128 = arith.constant 0 : index
      %195 = vector.load %arg10[%c0_127, %c0_128] : memref<8x128xf32, #tpu.memory_space<vmem>>, vector<8x128xf32>
      %196 = arith.mulf %195, %194 : vector<8x128xf32>
      %c0_129 = arith.constant 0 : index
      %c0_130 = arith.constant 0 : index
      %c0_131 = arith.constant 0 : index
      %197 = vector.load %arg6[%c0_129, %c0_130, %c0_131] : memref<1x8x128xf32, #tpu.memory_space<vmem>>, vector<1x8x128xf32>
      %198 = vector.shape_cast %197 : vector<1x8x128xf32> to vector<8x128xf32>
      %199 = vector.shape_cast %196 : vector<8x128xf32> to vector<1x8x128xf32>
      tpu.vector_store %arg6[%c0_129, %c0_130, %c0_131], %199 {strides = array<i32>} : memref<1x8x128xf32, #tpu.memory_space<vmem>>, vector<1x8x128xf32>,
    } else {
    }
    return
  }
  func.func @transform_0(%arg0: i32, %arg1: i32, %arg2: i32) -> (i32, i32, i32) {
    %c0_i32 = arith.constant 0 : i32
    %c0_i32_0 = arith.constant 0 : i32
    return %arg0, %arg1, %c0_i32 : i32, i32, i32
  }
  func.func @transform_1(%arg0: i32, %arg1: i32, %arg2: i32) -> (i32, i32, i32) {
    %c0_i32 = arith.constant 0 : i32
    %c0_i32_0 = arith.constant 0 : i32
    return %arg0, %arg2, %c0_i32 : i32, i32, i32
  }
  func.func @transform_2(%arg0: i32, %arg1: i32, %arg2: i32) -> (i32, i32, i32) {
    %c0_i32 = arith.constant 0 : i32
    %c0_i32_0 = arith.constant 0 : i32
    return %arg0, %arg2, %c0_i32 : i32, i32, i32
  }
  func.func @transform_3(%arg0: i32, %arg1: i32, %arg2: i32) -> (i32, i32, i32) {
    %c0_i32 = arith.constant 0 : i32
    %c0_i32_0 = arith.constant 0 : i32
    return %arg0, %arg1, %c0_i32 : i32, i32, i32
  }
}

</mosaic_0001>

<llo_original>
// kernel: tpu_custom_call.1
$region0: #{tpu_custom_call.1}
  #allocation0 [shape = 'u32[]', space=smem, size = 0x4, offset = 0x4, fixed_abs, tag = 'smem constant byte address 0x4 - core index']
  #allocation1 [shape = 'u32[144,128]{1,0:T(1,128)}', space=vmem, size = 0x12000, scoped, tag = 'internal scratch']
  #allocation2 [shape = 'f32[8,128]{1,0:T(8,128)}', space=vmem, size = 0x1000, scoped, tag = 'scratch operand']
  #allocation3 [shape = 'f32[4,8,1]{2,1,0:T(8,128)}', space=vmem, size = 0x4000, scoped, tag = 'scratch operand']
  #allocation4 [shape = 'f32[4,8,1]{2,1,0:T(8,128)}', space=vmem, size = 0x4000, scoped, tag = 'scratch operand']
  #allocation5 [shape = 'f32[8,128]{1,0:T(8,128)}', space=vmem, size = 0x1000, scoped, tag = 'scratch operand']
  %s0 = inlined_call_operand.hbm [shape: f32[2,8,128], index: 0, kind: input, shape index: {}]
  %s1 = inlined_call_operand.hbm [shape: f32[2,8,128], index: 1, kind: input, shape index: {}]
  %s2 = inlined_call_operand.hbm [shape: f32[2,8,128], index: 2, kind: input, shape index: {}]
  %s3 = inlined_call_operand.hbm [shape: f32[2,8,128], index: 3, kind: output, shape index: {}]
  %s4 = sld [smem:[#allocation0]]
  $region65: #{tpu_custom_call.1} parent=0
    _
  %s6 = ssub.s32 1, %s4
  %s7 = scalar_select 0, %s6, %s4
  $region1: #{tpu_custom_call.1} parent=0
    #allocation6 [shape = 'u8[8192]{0}', space=vmem, size = 0x2000, scoped, tag = 'input window, operand 0']
    #allocation7 [shape = 's32[2]{0}', space=sflag, size = 0x8, scoped, tag = 'scoped memory for tpu_custom_call.1']
    #allocation8 [shape = 's32[2]{0}', space=sflag, size = 0x8, scoped, tag = 'scoped memory for tpu_custom_call.1']
    #allocation9 [shape = 'u8[8192]{0}', space=vmem, size = 0x2000, scoped, tag = 'input window, operand 1']
    #allocation10 [shape = 's32[2]{0}', space=sflag, size = 0x8, scoped, tag = 'scoped memory for tpu_custom_call.1']
    #allocation11 [shape = 'u8[8192]{0}', space=vmem, size = 0x2000, scoped, tag = 'input window, operand 2']
    #allocation12 [shape = 'u8[8192]{0}', space=vmem, size = 0x2000, scoped, tag = 'output window, operand 0']
    %8 = vsyncpa [#allocation7], 0
    %s9 = scalar_lea.sflag [#allocation7], 1
    %10 = vsyncpa %s9, 0
    %11 = vsyncpa [#allocation10], 0
    %s12 = scalar_lea.sflag [#allocation10], 1
    %13 = vsyncpa %s12, 0
    %14 = vsyncpa [#allocation8], 0
    %s15 = scalar_lea.sflag [#allocation8], 1
    %16 = vsyncpa %s15, 0
    loop: start=0, step=1, limit=4
    $region2: #{tpu_custom_call.1} parent=1 // loop_pre_header
      _
    $region3: #{tpu_custom_call.1} parent=1 // loop_header
      %s18 = sphi 0, %s22
      %p19 = scmp.ge.s32.totalorder %s18, 4
      %s25 = sphi 0, %s44
      %s26 = sphi 0, %s40
      %s27 = sphi 0, %s36
      %s28 = sphi 0, %s25
      %s29 = sphi 0, %s26
      %s30 = sphi 0, %s27
      %s31 = sphi 0, %s28
      %s32 = sphi 0, %s29
      %s33 = sphi 0, %s30
      %s49 = sphi 0, %s51
      %s52 = sphi 0, %s49
      %s53 = sphi 0, %s52
      %s69 = sphi 0, %s53
      %s77 = sphi 0, %s79
      %s80 = sphi 0, %s77
      %s81 = sphi 0, %s80
      %s97 = sphi 0, %s81
      %s105 = sphi 0, %s107
      %s108 = sphi 0, %s105
      %s109 = sphi 0, %s108
      %s125 = sphi 0, %s109
      %s133 = sphi 0, %s135
      %s136 = sphi 0, %s133
      %s137 = sphi 0, %s136
      %s153 = sphi 0, %s137
    $region4: #{tpu_custom_call.1} parent=1 // loop_header_branch
      %21 = sbr.rel (%p19) target = $region8
    $region5: #{tpu_custom_call.1} parent=1 // loop_body
      %s23 = ssub.s32 %s18, 1
      %s24 = ssub.s32 %s18, 2
      %s34 = sadd.s32 1, %s27
      %p35 = scmp.ge.s32.totalorder %s34, 1
      %s36 = scalar_select %p35, 0, %s34
      %s37 = sadd.s32 1, %s26
      %s38 = scalar_select %p35, %s37, %s26
      %p39 = scmp.ge.s32.totalorder %s38, 1
      %s40 = scalar_select %p39, 0, %s38
      %s41 = sadd.s32 1, %s25
      %s42 = scalar_select %p39, %s41, %s25
      %p43 = scmp.ge.s32.totalorder %s42, 2
      %s44 = scalar_select %p43, 0, %s42
      %s45 = ssub.s32 %s25, %s44
      %s46 = ssub.s32 %s26, %s40
      %s47 = sor.u32 %s45, %s46
      %p48 = scmp.eq.s32.totalorder %s47, 0
      %s50 = sadd.s32 %s49, 1
      %s51 = scalar_select %p48, %s49, %s50
      %p54 = pneg %p48
      %p55 = scmp.eq.s32.totalorder %s18, 1
      %p56 = por %p54, %p55
      %p57 = scmp.ne.s32.totalorder %s49, %s52
      %p58 = scmp.eq.s32.totalorder %s18, 0
      %p59 = por %p57, %p58
      %p60 = scmp.ne.s32.totalorder %s49, %s52
      %p61 = scmp.eq.s32.totalorder %s23, 1
      %p62 = por %p60, %p61
      %p63 = scmp.ne.s32.totalorder %s52, %s53
      %p64 = scmp.eq.s32.totalorder %s23, 0
      %p65 = por %p63, %p64
      %p66 = scmp.ne.s32.totalorder %s52, %s53
      %p67 = scmp.eq.s32.totalorder %s24, 1
      %p68 = por %p66, %p67
      %p70 = scmp.ne.s32.totalorder %s53, %s69
      %p71 = scmp.eq.s32.totalorder %s24, 0
      %p72 = por %p70, %p71
      %s73 = ssub.s32 %s25, %s44
      %s74 = ssub.s32 %s27, %s36
      %s75 = sor.u32 %s73, %s74
      %p76 = scmp.eq.s32.totalorder %s75, 0
      %s78 = sadd.s32 %s77, 1
      %s79 = scalar_select %p76, %s77, %s78
      %p82 = pneg %p76
      %p83 = scmp.eq.s32.totalorder %s18, 1
      %p84 = por %p82, %p83
      %p85 = scmp.ne.s32.totalorder %s77, %s80
      %p86 = scmp.eq.s32.totalorder %s18, 0
      %p87 = por %p85, %p86
      %p88 = scmp.ne.s32.totalorder %s77, %s80
      %p89 = scmp.eq.s32.totalorder %s23, 1
      %p90 = por %p88, %p89
      %p91 = scmp.ne.s32.totalorder %s80, %s81
      %p92 = scmp.eq.s32.totalorder %s23, 0
      %p93 = por %p91, %p92
      %p94 = scmp.ne.s32.totalorder %s80, %s81
      %p95 = scmp.eq.s32.totalorder %s24, 1
      %p96 = por %p94, %p95
      %p98 = scmp.ne.s32.totalorder %s81, %s97
      %p99 = scmp.eq.s32.totalorder %s24, 0
      %p100 = por %p98, %p99
      %s101 = ssub.s32 %s25, %s44
      %s102 = ssub.s32 %s27, %s36
      %s103 = sor.u32 %s101, %s102
      %p104 = scmp.eq.s32.totalorder %s103, 0
      %s106 = sadd.s32 %s105, 1
      %s107 = scalar_select %p104, %s105, %s106
      %p110 = pneg %p104
      %p111 = scmp.eq.s32.totalorder %s18, 1
      %p112 = por %p110, %p111
      %p113 = scmp.ne.s32.totalorder %s105, %s108
      %p114 = scmp.eq.s32.totalorder %s18, 0
      %p115 = por %p113, %p114
      %p116 = scmp.ne.s32.totalorder %s105, %s108
      %p117 = scmp.eq.s32.totalorder %s23, 1
      %p118 = por %p116, %p117
      %p119 = scmp.ne.s32.totalorder %s108, %s109
      %p120 = scmp.eq.s32.totalorder %s23, 0
      %p121 = por %p119, %p120
      %p122 = scmp.ne.s32.totalorder %s108, %s109
      %p123 = scmp.eq.s32.totalorder %s24, 1
      %p124 = por %p122, %p123
      %p126 = scmp.ne.s32.totalorder %s109, %s125
      %p127 = scmp.eq.s32.totalorder %s24, 0
      %p128 = por %p126, %p127
      %s129 = ssub.s32 %s25, %s44
      %s130 = ssub.s32 %s26, %s40
      %s131 = sor.u32 %s129, %s130
      %p132 = scmp.eq.s32.totalorder %s131, 0
      %s134 = sadd.s32 %s133, 1
      %s135 = scalar_select %p132, %s133, %s134
      %p138 = pneg %p132
      %p139 = scmp.eq.s32.totalorder %s18, 1
      %p140 = por %p138, %p139
      %p141 = scmp.ne.s32.totalorder %s133, %s136
      %p142 = scmp.eq.s32.totalorder %s18, 0
      %p143 = por %p141, %p142
      %p144 = scmp.ne.s32.totalorder %s133, %s136
      %p145 = scmp.eq.s32.totalorder %s23, 1
      %p146 = por %p144, %p145
      %p147 = scmp.ne.s32.totalorder %s136, %s137
      %p148 = scmp.eq.s32.totalorder %s23, 0
      %p149 = por %p147, %p148
      %p150 = scmp.ne.s32.totalorder %s136, %s137
      %p151 = scmp.eq.s32.totalorder %s24, 1
      %p152 = por %p150, %p151
      %p154 = scmp.ne.s32.totalorder %s137, %s153
      %p155 = scmp.eq.s32.totalorder %s24, 0
      %p156 = por %p154, %p155
      %p157 = scmp.le.s32.totalorder 1, %s18
      %p158 = scmp.lt.s32.totalorder %s18, 3
      %p159 = pnand %p157, %p158
      %p160 = pneg %p159
      // Predicated region
      $region9: #{tpu_custom_call.1} parent=5 // pred_check
        _
      $region10: #{tpu_custom_call.1} parent=5 // pred_check_branch
        %162 = sbr.rel (%p159) target = $region12
      $region11: #{tpu_custom_call.1} parent=5 // pred_region
        %s163 = ssub.s32 %s18, 1
      $region12: #{tpu_custom_call.1} parent=5 // pred_fallthru
        _
      %p164 = scmp.lt.s32.totalorder %s18, 2
      // Predicated region
      $region13: #{tpu_custom_call.1} parent=5 // pred_check
        %p165 = pneg %p164
      $region14: #{tpu_custom_call.1} parent=5 // pred_check_branch
        %167 = sbr.rel (%p165) target = $region16
      $region15: #{tpu_custom_call.1} parent=5 // pred_region
        // Predicated region
        $region17: #{tpu_custom_call.1} parent=15 // pred_check
          %p168 = pneg %p59
        $region18: #{tpu_custom_call.1} parent=15 // pred_check_branch
          %170 = sbr.rel (%p168) target = $region20
        $region19: #{tpu_custom_call.1} parent=15 // pred_region
          %s171 = sand.u32 %s49, 1
          %s172 = scalar_lea.sflag [#allocation7], %s171
          %s173 = sand.u32 %s49, 1
          %s174 = smul.addr %s173, 8
          %s175 = scalar_lea.vmem [#allocation6], %s174
          %s177 = ssub.s32 128, 128
          %178 = vsyncadd %s172, %s177
          %s179 = sadd.s32 %s26, %s25
          %s180 = smul.addr %s179, 128
          %s181 = scalar_lea.hbm %s0, %s180
          %s183 = sshll.u32 %s175, 4
          %s184 = int_to_ptr.vmem [resolvable:$true] %s183
          %186 = dma.hbm_to_vmem [thread:$0]  %s181, 128, %s184, %s172
        $region20: #{tpu_custom_call.1} parent=15 // pred_fallthru
          _
        // Predicated region
        $region21: #{tpu_custom_call.1} parent=15 // pred_check
          %p187 = pneg %p87
        $region22: #{tpu_custom_call.1} parent=15 // pred_check_branch
          %189 = sbr.rel (%p187) target = $region24
        $region23: #{tpu_custom_call.1} parent=15 // pred_region
          %s190 = sand.u32 %s18, 1
          %s191 = scalar_lea.sflag [#allocation10], %s190
          %s192 = sand.u32 %s77, 1
          %s193 = smul.addr %s192, 8
          %s194 = scalar_lea.vmem [#allocation9], %s193
          %s196 = ssub.s32 128, 128
          %197 = vsyncadd %s191, %s196
          %s198 = sadd.s32 %s27, %s25
          %s199 = smul.addr %s198, 128
          %s200 = scalar_lea.hbm %s1, %s199
          %s202 = sshll.u32 %s194, 4
          %s203 = int_to_ptr.vmem [resolvable:$true] %s202
          %205 = dma.hbm_to_vmem [thread:$0]  %s200, 128, %s203, %s191
        $region24: #{tpu_custom_call.1} parent=15 // pred_fallthru
          _
        // Predicated region
        $region25: #{tpu_custom_call.1} parent=15 // pred_check
          %p206 = pneg %p115
        $region26: #{tpu_custom_call.1} parent=15 // pred_check_branch
          %208 = sbr.rel (%p206) target = $region28
        $region27: #{tpu_custom_call.1} parent=15 // pred_region
          %s209 = sand.u32 %s18, 1
          %s210 = scalar_lea.sflag [#allocation10], %s209
          %s211 = sand.u32 %s105, 1
          %s212 = smul.addr %s211, 8
          %s213 = scalar_lea.vmem [#allocation11], %s212
          %s215 = ssub.s32 128, 128
          %216 = vsyncadd %s210, %s215
          %s217 = sadd.s32 %s27, %s25
          %s218 = smul.addr %s217, 128
          %s219 = scalar_lea.hbm %s2, %s218
          %s221 = sshll.u32 %s213, 4
          %s222 = int_to_ptr.vmem [resolvable:$true] %s221
          %224 = dma.hbm_to_vmem [thread:$0]  %s219, 128, %s222, %s210
        $region28: #{tpu_custom_call.1} parent=15 // pred_fallthru
          _
      $region16: #{tpu_custom_call.1} parent=5 // pred_fallthru
        _
      %p225 = scmp.le.s32.totalorder 1, %s18
      %p226 = scmp.lt.s32.totalorder %s18, 3
      %p227 = pnand %p225, %p226
      %p228 = pneg %p227
      // Predicated region
      $region29: #{tpu_custom_call.1} parent=5 // pred_check
        _
      $region30: #{tpu_custom_call.1} parent=5 // pred_check_branch
        %230 = sbr.rel (%p227) target = $region32
      $region31: #{tpu_custom_call.1} parent=5 // pred_region
        %s231 = ssub.s32 %s18, 1
        %s232 = sand.u32 %s52, 1
        %s233 = scalar_lea.sflag [#allocation7], %s232
        %s234 = sand.u32 %s52, 1
        %s235 = smul.addr %s234, 8
        %s236 = scalar_lea.vmem [#allocation6], %s235
        // Predicated region
        $region33: #{tpu_custom_call.1} parent=31 // pred_check
          %p237 = pneg %p65
        $region34: #{tpu_custom_call.1} parent=31 // pred_check_branch
          %239 = sbr.rel (%p237) target = $region36
        $region35: #{tpu_custom_call.1} parent=31 // pred_region
          %240 = dma.done %s233, 128
        $region36: #{tpu_custom_call.1} parent=31 // pred_fallthru
          _
        %s241 = sand.u32 %s23, 1
        %s242 = scalar_lea.sflag [#allocation10], %s241
        %s243 = sand.u32 %s80, 1
        %s244 = smul.addr %s243, 8
        %s245 = scalar_lea.vmem [#allocation9], %s244
        // Predicated region
        $region37: #{tpu_custom_call.1} parent=31 // pred_check
          %p246 = pneg %p93
        $region38: #{tpu_custom_call.1} parent=31 // pred_check_branch
          %248 = sbr.rel (%p246) target = $region40
        $region39: #{tpu_custom_call.1} parent=31 // pred_region
          %249 = dma.done %s242, 128
        $region40: #{tpu_custom_call.1} parent=31 // pred_fallthru
          _
        %s250 = sand.u32 %s23, 1
        %s251 = scalar_lea.sflag [#allocation10], %s250
        %s252 = sand.u32 %s108, 1
        %s253 = smul.addr %s252, 8
        %s254 = scalar_lea.vmem [#allocation11], %s253
        // Predicated region
        $region41: #{tpu_custom_call.1} parent=31 // pred_check
          %p255 = pneg %p121
        $region42: #{tpu_custom_call.1} parent=31 // pred_check_branch
          %257 = sbr.rel (%p255) target = $region44
        $region43: #{tpu_custom_call.1} parent=31 // pred_region
          %258 = dma.done %s251, 128
        $region44: #{tpu_custom_call.1} parent=31 // pred_fallthru
          _
        %s259 = sand.u32 %s52, 1
        %s260 = scalar_lea.sflag [#allocation7], %s259
        %s261 = sand.u32 %s52, 1
        %s262 = smul.addr %s261, 8
        %s263 = scalar_lea.vmem [#allocation6], %s262
        %p264 = pneg %p65
        %p265 = pneg %p62
        %s266 = sand.u32 %s23, 1
        %s267 = scalar_lea.sflag [#allocation10], %s266
        %s268 = sand.u32 %s80, 1
        %s269 = smul.addr %s268, 8
        %s270 = scalar_lea.vmem [#allocation9], %s269
        %p271 = pneg %p93
        %p272 = pneg %p90
        %s273 = sand.u32 %s23, 1
        %s274 = scalar_lea.sflag [#allocation10], %s273
        %s275 = sand.u32 %s108, 1
        %s276 = smul.addr %s275, 8
        %s277 = scalar_lea.vmem [#allocation11], %s276
        %p278 = pneg %p121
        %p279 = pneg %p118
        %p280 = pneg %p149
        %p281 = pneg %p146
        %s282 = sand.u32 %s136, 1
        %s283 = scalar_lea.sflag [#allocation8], %s282
        %s284 = sand.u32 %s136, 1
        %s285 = smul.addr %s284, 8
        %s286 = scalar_lea.vmem [#allocation12], %s285
        %p287 = scmp.eq.s32.totalorder %s30, 0
        // Predicated region
        $region45: #{tpu_custom_call.1} parent=31 // pred_check
          %p288 = pneg %p287
        $region46: #{tpu_custom_call.1} parent=31 // pred_check_branch
          %290 = sbr.rel (%p288) target = $region48
        $region47: #{tpu_custom_call.1} parent=31 // pred_region
          %v291 = vld [vmem:[%s236] sm:$0xff]
          %v292 = vmul.f32 %v291, 0.17677669
          %293 = vst [vmem:[#allocation2] sm:$0xff] %v292
          %vm294 = vcmask 7168
          %295 = vst.msk [vmem:[#allocation3] sm:$0xff] %vm294, -inf
          %296 = vst.msk [vmem:[#allocation3 + $0x8] sm:$0xff] %vm294, -inf
          %297 = vst.msk [vmem:[#allocation3 + $0x10] sm:$0xff] %vm294, -inf
          %298 = vst.msk [vmem:[#allocation3 + $0x18] sm:$0xff] %vm294, -inf
          %299 = vst.msk [vmem:[#allocation4] sm:$0xff] %vm294, 0.0
          %300 = vst.msk [vmem:[#allocation4 + $0x8] sm:$0xff] %vm294, 0.0
          %301 = vst.msk [vmem:[#allocation4 + $0x10] sm:$0xff] %vm294, 0.0
          %302 = vst.msk [vmem:[#allocation4 + $0x18] sm:$0xff] %vm294, 0.0
          %303 = vst [vmem:[#allocation5] sm:$0xff] 0.0
        $region48: #{tpu_custom_call.1} parent=31 // pred_fallthru
          _
        %v304 = vld [vmem:[#allocation2] sm:$0xff]
        %v305 = vld [vmem:[%s245] sm:$0xff]
        %v306 = vld [vmem:[%s254] sm:$0xff]
        %vm307 = vcmask 261120
        %v309 = vsel %vm307, %v304, 0
        %v312 = vsel %vm307, %v305, 0
        %314 = vmatprep.subr.mxu0 0.0
        %315 = vmatpush1.xpose.msra.mxu0 %v312
        %316 = vmatprep.subr.mxu0 0.0
        %317 = vmatpush1.xpose.msra.mxu0 0.0
        %318 = vmatprep.subr.mxu0 0.0
        %319 = vmatpush1.xpose.msra.mxu0 0.0
        %320 = vmatprep.subr.mxu0 0.0
        %321 = vmatpush1.xpose.msra.mxu0 0.0
        %322 = vmatprep.subr.mxu0 0.0
        %323 = vmatpush1.xpose.msra.mxu0 0.0
        %324 = vmatprep.subr.mxu0 0.0
        %325 = vmatpush1.xpose.msra.mxu0 0.0
        %326 = vmatprep.subr.mxu0 0.0
        %327 = vmatpush1.xpose.msra.mxu0 0.0
        %328 = vmatprep.subr.mxu0 0.0
        %329 = vmatpush1.xpose.msra.mxu0 0.0
        %330 = vmatprep.subr.mxu0 0.0
        %331 = vmatpush1.xpose.msra.mxu0 0.0
        %332 = vmatprep.subr.mxu0 0.0
        %333 = vmatpush1.xpose.msra.mxu0 0.0
        %334 = vmatprep.subr.mxu0 0.0
        %335 = vmatpush1.xpose.msra.mxu0 0.0
        %336 = vmatprep.subr.mxu0 0.0
        %337 = vmatpush1.xpose.msra.mxu0 0.0
        %338 = vmatprep.subr.mxu0 0.0
        %339 = vmatpush1.xpose.msra.mxu0 0.0
        %340 = vmatprep.subr.mxu0 0.0
        %341 = vmatpush1.xpose.msra.mxu0 0.0
        %342 = vmatprep.subr.mxu0 0.0
        %343 = vmatpush1.xpose.msra.mxu0 0.0
        %344 = vmatprep.subr.mxu0 0.0
        %345 = vmatpush1.xpose.msra.mxu0 0.0
        %346 = vmatprep.subr.mxu0 0.0
        %347 = vmatpush1.xpose.msra.mxu0 0.0
        %348 = vmatprep.subr.mxu0 0.0
        %349 = vmatpush1.xpose.msra.mxu0 0.0
        %350 = vmatprep.subr.mxu0 0.0
        %351 = vmatpush1.xpose.msra.mxu0 0.0
        %352 = vmatprep.subr.mxu0 0.0
        %353 = vmatpush1.xpose.msra.mxu0 0.0
        %354 = vmatprep.subr.mxu0 0.0
        %355 = vmatpush1.xpose.msra.mxu0 0.0
        %356 = vmatprep.subr.mxu0 0.0
        %357 = vmatpush1.xpose.msra.mxu0 0.0
        %358 = vmatprep.subr.mxu0 0.0
        %359 = vmatpush1.xpose.msra.mxu0 0.0
        %360 = vmatprep.subr.mxu0 0.0
        %361 = vmatpush1.xpose.msra.mxu0 0.0
        %362 = vmatprep.subr.mxu0 0.0
        %363 = vmatpush1.xpose.msra.mxu0 0.0
        %364 = vmatprep.subr.mxu0 0.0
        %365 = vmatpush1.xpose.msra.mxu0 0.0
        %366 = vmatprep.subr.mxu0 0.0
        %367 = vmatpush1.xpose.msra.mxu0 0.0
        %368 = vmatprep.subr.mxu0 0.0
        %369 = vmatpush1.xpose.msra.mxu0 0.0
        %370 = vmatprep.subr.mxu0 0.0
        %371 = vmatpush1.xpose.msra.mxu0 0.0
        %372 = vmatprep.subr.mxu0 0.0
        %373 = vmatpush1.xpose.msra.mxu0 0.0
        %374 = vmatprep.subr.mxu0 0.0
        %375 = vmatpush1.xpose.msra.mxu0 0.0
        %376 = vmatprep.subr.mxu0 0.0
        %377 = vmatpush1.xpose.msra.mxu0 0.0
        %378 = vmatprep.mubr.f32.mxu0 0.0
        %379 = vmatmul.mubr.f32.gmra.mrb[0].mxu0 %v309
        %v380 = vpop.f32.mrb[0].mxu0
        %v381 = vadd.f32 0.0, %v380
        %v382 = vpop.f32.mrb[0].mxu0
        %383 = vdwg.mxu0
        %v384 = vld [vmem:[#allocation3] sm:$0xff]
        %vm385 = vcmask 64512
        %v386 = vsel %vm385, %v381, -inf
        %387 = vmax.xlane.f32.xlu0 %v386
        %v388 = vpop.xlane.xlu0 %387
        %v389 = vmax.f32 %v384, %v388
        %v390 = vsub.f32 %v384, %v389
        %v391 = vmul.f32 %v390, 1.442695
        %v392 = vpow.pop %v391
        %394 = vset.pattern.permute.xlu0 0
        %395 = vperm.xlu0 %394, %v389
        %v396 = vpop.permute.xlu0 %395
        %v398 = vsub.f32 %v381, %v396
        %v399 = vmul.f32 %v398, 1.442695
        %v400 = vpow.pop %v399
        %v401 = vld [vmem:[#allocation4] sm:$0xff]
        %v402 = vmul.f32 %v392, %v401
        %v403 = vsel %vm385, %v400, 0.0
        %404 = vadd.xlane.f32.xlu0 %v403
        %v405 = vpop.xlane.xlu0 %404
        %v406 = vadd.f32 %v402, %v405
        %vm407 = vcmask 7168
        %408 = vst.msk [vmem:[#allocation4] sm:$0xff] %vm407, %v406
        %v409 = vld [vmem:[#allocation5] sm:$0xff]
        %411 = vset.pattern.permute.xlu0 0
        %412 = vperm.xlu0 %411, %v392
        %v413 = vpop.permute.xlu0 %412
        %v415 = vmul.f32 %v413, %v409
        %v417 = vsel %vm385, %v400, 0
        %419 = vmatprep.subr.mxu0 0.0
        %420 = vmatpush1.msra.mxu0 %v306
        %421 = vmatprep.subr.mxu0 0.0
        %422 = vmatpush1.msra.mxu0 0.0
        %423 = vmatprep.subr.mxu0 0.0
        %424 = vmatpush1.msra.mxu0 0.0
        %425 = vmatprep.subr.mxu0 0.0
        %426 = vmatpush1.msra.mxu0 0.0
        %427 = vmatprep.subr.mxu0 0.0
        %428 = vmatpush1.msra.mxu0 0.0
        %429 = vmatprep.subr.mxu0 0.0
        %430 = vmatpush1.msra.mxu0 0.0
        %431 = vmatprep.subr.mxu0 0.0
        %432 = vmatpush1.msra.mxu0 0.0
        %433 = vmatprep.subr.mxu0 0.0
        %434 = vmatpush1.msra.mxu0 0.0
        %435 = vmatprep.subr.mxu0 0.0
        %436 = vmatpush1.msra.mxu0 0.0
        %437 = vmatprep.subr.mxu0 0.0
        %438 = vmatpush1.msra.mxu0 0.0
        %439 = vmatprep.subr.mxu0 0.0
        %440 = vmatpush1.msra.mxu0 0.0
        %441 = vmatprep.subr.mxu0 0.0
        %442 = vmatpush1.msra.mxu0 0.0
        %443 = vmatprep.subr.mxu0 0.0
        %444 = vmatpush1.msra.mxu0 0.0
        %445 = vmatprep.subr.mxu0 0.0
        %446 = vmatpush1.msra.mxu0 0.0
        %447 = vmatprep.subr.mxu0 0.0
        %448 = vmatpush1.msra.mxu0 0.0
        %449 = vmatprep.subr.mxu0 0.0
        %450 = vmatpush1.msra.mxu0 0.0
        %451 = vmatprep.subr.mxu0 0.0
        %452 = vmatpush1.msra.mxu0 0.0
        %453 = vmatprep.subr.mxu0 0.0
        %454 = vmatpush1.msra.mxu0 0.0
        %455 = vmatprep.subr.mxu0 0.0
        %456 = vmatpush1.msra.mxu0 0.0
        %457 = vmatprep.subr.mxu0 0.0
        %458 = vmatpush1.msra.mxu0 0.0
        %459 = vmatprep.subr.mxu0 0.0
        %460 = vmatpush1.msra.mxu0 0.0
        %461 = vmatprep.subr.mxu0 0.0
        %462 = vmatpush1.msra.mxu0 0.0
        %463 = vmatprep.subr.mxu0 0.0
        %464 = vmatpush1.msra.mxu0 0.0
        %465 = vmatprep.subr.mxu0 0.0
        %466 = vmatpush1.msra.mxu0 0.0
        %467 = vmatprep.subr.mxu0 0.0
        %468 = vmatpush1.msra.mxu0 0.0
        %469 = vmatprep.subr.mxu0 0.0
        %470 = vmatpush1.msra.mxu0 0.0
        %471 = vmatprep.subr.mxu0 0.0
        %472 = vmatpush1.msra.mxu0 0.0
        %473 = vmatprep.subr.mxu0 0.0
        %474 = vmatpush1.msra.mxu0 0.0
        %475 = vmatprep.subr.mxu0 0.0
        %476 = vmatpush1.msra.mxu0 0.0
        %477 = vmatprep.subr.mxu0 0.0
        %478 = vmatpush1.msra.mxu0 0.0
        %479 = vmatprep.subr.mxu0 0.0
        %480 = vmatpush1.msra.mxu0 0.0
        %481 = vmatprep.subr.mxu0 0.0
        %482 = vmatpush1.msra.mxu0 0.0
        %483 = vmatprep.mubr.f32.mxu0 0.0
        %484 = vmatmul.mubr.f32.gmra.mrb[0].mxu0 %v417
        %v485 = vpop.f32.mrb[0].mxu0
        %v486 = vadd.f32 0.0, %v485
        %v487 = vpop.f32.mrb[0].mxu0
        %488 = vdwg.mxu0
        %v489 = vadd.f32 %v415, %v486
        %490 = vst.msk [vmem:[#allocation5] sm:$0xff] %vm307, %v489
        %491 = vst.msk [vmem:[#allocation3] sm:$0xff] %vm407, %v389
        %v492 = vld [vmem:[#allocation2] sm:$0xff]
        %v493 = vld [vmem:[%s245] sm:$0xff]
        %v494 = vld [vmem:[%s254] sm:$0xff]
        %496 = vrot.lane.b32.xlu0 %v492, 96
        %v497 = vpop.permute.xlu0 %496
        %499 = vrot.lane.b32.xlu0 %v493, 96
        %v500 = vpop.permute.xlu0 %499
        %v501 = vsel %vm307, %v497, 0
        %v503 = vsel %vm307, %v500, 0
        %505 = vmatprep.subr.mxu0 0.0
        %506 = vmatpush1.xpose.msra.mxu0 %v503
        %507 = vmatprep.subr.mxu0 0.0
        %508 = vmatpush1.xpose.msra.mxu0 0.0
        %509 = vmatprep.subr.mxu0 0.0
        %510 = vmatpush1.xpose.msra.mxu0 0.0
        %511 = vmatprep.subr.mxu0 0.0
        %512 = vmatpush1.xpose.msra.mxu0 0.0
        %513 = vmatprep.subr.mxu0 0.0
        %514 = vmatpush1.xpose.msra.mxu0 0.0
        %515 = vmatprep.subr.mxu0 0.0
        %516 = vmatpush1.xpose.msra.mxu0 0.0
        %517 = vmatprep.subr.mxu0 0.0
        %518 = vmatpush1.xpose.msra.mxu0 0.0
        %519 = vmatprep.subr.mxu0 0.0
        %520 = vmatpush1.xpose.msra.mxu0 0.0
        %521 = vmatprep.subr.mxu0 0.0
        %522 = vmatpush1.xpose.msra.mxu0 0.0
        %523 = vmatprep.subr.mxu0 0.0
        %524 = vmatpush1.xpose.msra.mxu0 0.0
        %525 = vmatprep.subr.mxu0 0.0
        %526 = vmatpush1.xpose.msra.mxu0 0.0
        %527 = vmatprep.subr.mxu0 0.0
        %528 = vmatpush1.xpose.msra.mxu0 0.0
        %529 = vmatprep.subr.mxu0 0.0
        %530 = vmatpush1.xpose.msra.mxu0 0.0
        %531 = vmatprep.subr.mxu0 0.0
        %532 = vmatpush1.xpose.msra.mxu0 0.0
        %533 = vmatprep.subr.mxu0 0.0
        %534 = vmatpush1.xpose.msra.mxu0 0.0
        %535 = vmatprep.subr.mxu0 0.0
        %536 = vmatpush1.xpose.msra.mxu0 0.0
        %537 = vmatprep.subr.mxu0 0.0
        %538 = vmatpush1.xpose.msra.mxu0 0.0
        %539 = vmatprep.subr.mxu0 0.0
        %540 = vmatpush1.xpose.msra.mxu0 0.0
        %541 = vmatprep.subr.mxu0 0.0
        %542 = vmatpush1.xpose.msra.mxu0 0.0
        %543 = vmatprep.subr.mxu0 0.0
        %544 = vmatpush1.xpose.msra.mxu0 0.0
        %545 = vmatprep.subr.mxu0 0.0
        %546 = vmatpush1.xpose.msra.mxu0 0.0
        %547 = vmatprep.subr.mxu0 0.0
        %548 = vmatpush1.xpose.msra.mxu0 0.0
        %549 = vmatprep.subr.mxu0 0.0
        %550 = vmatpush1.xpose.msra.mxu0 0.0
        %551 = vmatprep.subr.mxu0 0.0
        %552 = vmatpush1.xpose.msra.mxu0 0.0
        %553 = vmatprep.subr.mxu0 0.0
        %554 = vmatpush1.xpose.msra.mxu0 0.0
        %555 = vmatprep.subr.mxu0 0.0
        %556 = vmatpush1.xpose.msra.mxu0 0.0
        %557 = vmatprep.subr.mxu0 0.0
        %558 = vmatpush1.xpose.msra.mxu0 0.0
        %559 = vmatprep.subr.mxu0 0.0
        %560 = vmatpush1.xpose.msra.mxu0 0.0
        %561 = vmatprep.subr.mxu0 0.0
        %562 = vmatpush1.xpose.msra.mxu0 0.0
        %563 = vmatprep.subr.mxu0 0.0
        %564 = vmatpush1.xpose.msra.mxu0 0.0
        %565 = vmatprep.subr.mxu0 0.0
        %566 = vmatpush1.xpose.msra.mxu0 0.0
        %567 = vmatprep.subr.mxu0 0.0
        %568 = vmatpush1.xpose.msra.mxu0 0.0
        %569 = vmatprep.mubr.f32.mxu0 0.0
        %570 = vmatmul.mubr.f32.gmra.mrb[0].mxu0 %v501
        %v571 = vpop.f32.mrb[0].mxu0
        %v572 = vadd.f32 0.0, %v571
        %v573 = vpop.f32.mrb[0].mxu0
        %574 = vdwg.mxu0
        %s575 = scalar_lea.vmem [#allocation3], 8
        %v576 = vld [vmem:[%s575] sm:$0xff]
        %v577 = vsel %vm385, %v572, -inf
        %578 = vmax.xlane.f32.xlu0 %v577
        %v579 = vpop.xlane.xlu0 %578
        %v580 = vmax.f32 %v576, %v579
        %v581 = vsub.f32 %v576, %v580
        %v582 = vmul.f32 %v581, 1.442695
        %v583 = vpow.pop %v582
        %585 = vset.pattern.permute.xlu0 0
        %586 = vperm.xlu0 %585, %v580
        %v587 = vpop.permute.xlu0 %586
        %v589 = vsub.f32 %v572, %v587
        %v590 = vmul.f32 %v589, 1.442695
        %v591 = vpow.pop %v590
        %s592 = scalar_lea.vmem [#allocation4], 8
        %v593 = vld [vmem:[%s592] sm:$0xff]
        %v594 = vmul.f32 %v583, %v593
        %v595 = vsel %vm385, %v591, 0.0
        %596 = vadd.xlane.f32.xlu0 %v595
        %v597 = vpop.xlane.xlu0 %596
        %v598 = vadd.f32 %v594, %v597
        %599 = vst.msk [vmem:[%s592] sm:$0xff] %vm407, %v598
        %v600 = vld [vmem:[#allocation5] sm:$0xff]
        %602 = vset.pattern.permute.xlu0 0
        %603 = vperm.xlu0 %602, %v583
        %v604 = vpop.permute.xlu0 %603
        %v606 = vmul.f32 %v604, %v600
        %608 = vrot.lane.b32.xlu0 %v494, 96
        %v609 = vpop.permute.xlu0 %608
        %v612 = vsel %vm385, %v591, 0
        %614 = vmatprep.subr.mxu0 0.0
        %615 = vmatpush1.msra.mxu0 %v609
        %616 = vmatprep.subr.mxu0 0.0
        %617 = vmatpush1.msra.mxu0 0.0
        %618 = vmatprep.subr.mxu0 0.0
        %619 = vmatpush1.msra.mxu0 0.0
        %620 = vmatprep.subr.mxu0 0.0
        %621 = vmatpush1.msra.mxu0 0.0
        %622 = vmatprep.subr.mxu0 0.0
        %623 = vmatpush1.msra.mxu0 0.0
        %624 = vmatprep.subr.mxu0 0.0
        %625 = vmatpush1.msra.mxu0 0.0
        %626 = vmatprep.subr.mxu0 0.0
        %627 = vmatpush1.msra.mxu0 0.0
        %628 = vmatprep.subr.mxu0 0.0
        %629 = vmatpush1.msra.mxu0 0.0
        %630 = vmatprep.subr.mxu0 0.0
        %631 = vmatpush1.msra.mxu0 0.0
        %632 = vmatprep.subr.mxu0 0.0
        %633 = vmatpush1.msra.mxu0 0.0
        %634 = vmatprep.subr.mxu0 0.0
        %635 = vmatpush1.msra.mxu0 0.0
        %636 = vmatprep.subr.mxu0 0.0
        %637 = vmatpush1.msra.mxu0 0.0
        %638 = vmatprep.subr.mxu0 0.0
        %639 = vmatpush1.msra.mxu0 0.0
        %640 = vmatprep.subr.mxu0 0.0
        %641 = vmatpush1.msra.mxu0 0.0
        %642 = vmatprep.subr.mxu0 0.0
        %643 = vmatpush1.msra.mxu0 0.0
        %644 = vmatprep.subr.mxu0 0.0
        %645 = vmatpush1.msra.mxu0 0.0
        %646 = vmatprep.subr.mxu0 0.0
        %647 = vmatpush1.msra.mxu0 0.0
        %648 = vmatprep.subr.mxu0 0.0
        %649 = vmatpush1.msra.mxu0 0.0
        %650 = vmatprep.subr.mxu0 0.0
        %651 = vmatpush1.msra.mxu0 0.0
        %652 = vmatprep.subr.mxu0 0.0
        %653 = vmatpush1.msra.mxu0 0.0
        %654 = vmatprep.subr.mxu0 0.0
        %655 = vmatpush1.msra.mxu0 0.0
        %656 = vmatprep.subr.mxu0 0.0
        %657 = vmatpush1.msra.mxu0 0.0
        %658 = vmatprep.subr.mxu0 0.0
        %659 = vmatpush1.msra.mxu0 0.0
        %660 = vmatprep.subr.mxu0 0.0
        %661 = vmatpush1.msra.mxu0 0.0
        %662 = vmatprep.subr.mxu0 0.0
        %663 = vmatpush1.msra.mxu0 0.0
        %664 = vmatprep.subr.mxu0 0.0
        %665 = vmatpush1.msra.mxu0 0.0
        %666 = vmatprep.subr.mxu0 0.0
        %667 = vmatpush1.msra.mxu0 0.0
        %668 = vmatprep.subr.mxu0 0.0
        %669 = vmatpush1.msra.mxu0 0.0
        %670 = vmatprep.subr.mxu0 0.0
        %671 = vmatpush1.msra.mxu0 0.0
        %672 = vmatprep.subr.mxu0 0.0
        %673 = vmatpush1.msra.mxu0 0.0
        %674 = vmatprep.subr.mxu0 0.0
        %675 = vmatpush1.msra.mxu0 0.0
        %676 = vmatprep.subr.mxu0 0.0
        %677 = vmatpush1.msra.mxu0 0.0
        %678 = vmatprep.mubr.f32.mxu0 0.0
        %679 = vmatmul.mubr.f32.gmra.mrb[0].mxu0 %v612
        %v680 = vpop.f32.mrb[0].mxu0
        %v681 = vadd.f32 0.0, %v680
        %v682 = vpop.f32.mrb[0].mxu0
        %683 = vdwg.mxu0
        %685 = vrot.lane.b32.xlu0 %v681, 32
        %v686 = vpop.permute.xlu0 %685
        %v688 = vadd.f32 %v606, %v686
        %vm689 = vcmask 523520
        %690 = vst.msk [vmem:[#allocation5] sm:$0xff] %vm689, %v688
        %691 = vst.msk [vmem:[%s575] sm:$0xff] %vm407, %v580
        %v692 = vld [vmem:[#allocation2] sm:$0xff]
        %v693 = vld [vmem:[%s245] sm:$0xff]
        %v694 = vld [vmem:[%s254] sm:$0xff]
        %696 = vrot.lane.b32.xlu0 %v692, 64
        %v697 = vpop.permute.xlu0 %696
        %699 = vrot.lane.b32.xlu0 %v693, 64
        %v700 = vpop.permute.xlu0 %699
        %v701 = vsel %vm307, %v697, 0
        %v703 = vsel %vm307, %v700, 0
        %705 = vmatprep.subr.mxu0 0.0
        %706 = vmatpush1.xpose.msra.mxu0 %v703
        %707 = vmatprep.subr.mxu0 0.0
        %708 = vmatpush1.xpose.msra.mxu0 0.0
        %709 = vmatprep.subr.mxu0 0.0
        %710 = vmatpush1.xpose.msra.mxu0 0.0
        %711 = vmatprep.subr.mxu0 0.0
        %712 = vmatpush1.xpose.msra.mxu0 0.0
        %713 = vmatprep.subr.mxu0 0.0
        %714 = vmatpush1.xpose.msra.mxu0 0.0
        %715 = vmatprep.subr.mxu0 0.0
        %716 = vmatpush1.xpose.msra.mxu0 0.0
        %717 = vmatprep.subr.mxu0 0.0
        %718 = vmatpush1.xpose.msra.mxu0 0.0
        %719 = vmatprep.subr.mxu0 0.0
        %720 = vmatpush1.xpose.msra.mxu0 0.0
        %721 = vmatprep.subr.mxu0 0.0
        %722 = vmatpush1.xpose.msra.mxu0 0.0
        %723 = vmatprep.subr.mxu0 0.0
        %724 = vmatpush1.xpose.msra.mxu0 0.0
        %725 = vmatprep.subr.mxu0 0.0
        %726 = vmatpush1.xpose.msra.mxu0 0.0
        %727 = vmatprep.subr.mxu0 0.0
        %728 = vmatpush1.xpose.msra.mxu0 0.0
        %729 = vmatprep.subr.mxu0 0.0
        %730 = vmatpush1.xpose.msra.mxu0 0.0
        %731 = vmatprep.subr.mxu0 0.0
        %732 = vmatpush1.xpose.msra.mxu0 0.0
        %733 = vmatprep.subr.mxu0 0.0
        %734 = vmatpush1.xpose.msra.mxu0 0.0
        %735 = vmatprep.subr.mxu0 0.0
        %736 = vmatpush1.xpose.msra.mxu0 0.0
        %737 = vmatprep.subr.mxu0 0.0
        %738 = vmatpush1.xpose.msra.mxu0 0.0
        %739 = vmatprep.subr.mxu0 0.0
        %740 = vmatpush1.xpose.msra.mxu0 0.0
        %741 = vmatprep.subr.mxu0 0.0
        %742 = vmatpush1.xpose.msra.mxu0 0.0
        %743 = vmatprep.subr.mxu0 0.0
        %744 = vmatpush1.xpose.msra.mxu0 0.0
        %745 = vmatprep.subr.mxu0 0.0
        %746 = vmatpush1.xpose.msra.mxu0 0.0
        %747 = vmatprep.subr.mxu0 0.0
        %748 = vmatpush1.xpose.msra.mxu0 0.0
        %749 = vmatprep.subr.mxu0 0.0
        %750 = vmatpush1.xpose.msra.mxu0 0.0
        %751 = vmatprep.subr.mxu0 0.0
        %752 = vmatpush1.xpose.msra.mxu0 0.0
        %753 = vmatprep.subr.mxu0 0.0
        %754 = vmatpush1.xpose.msra.mxu0 0.0
        %755 = vmatprep.subr.mxu0 0.0
        %756 = vmatpush1.xpose.msra.mxu0 0.0
        %757 = vmatprep.subr.mxu0 0.0
        %758 = vmatpush1.xpose.msra.mxu0 0.0
        %759 = vmatprep.subr.mxu0 0.0
        %760 = vmatpush1.xpose.msra.mxu0 0.0
        %761 = vmatprep.subr.mxu0 0.0
        %762 = vmatpush1.xpose.msra.mxu0 0.0
        %763 = vmatprep.subr.mxu0 0.0
        %764 = vmatpush1.xpose.msra.mxu0 0.0
        %765 = vmatprep.subr.mxu0 0.0
        %766 = vmatpush1.xpose.msra.mxu0 0.0
        %767 = vmatprep.subr.mxu0 0.0
        %768 = vmatpush1.xpose.msra.mxu0 0.0
        %769 = vmatprep.mubr.f32.mxu0 0.0
        %770 = vmatmul.mubr.f32.gmra.mrb[0].mxu0 %v701
        %v771 = vpop.f32.mrb[0].mxu0
        %v772 = vadd.f32 0.0, %v771
        %v773 = vpop.f32.mrb[0].mxu0
        %774 = vdwg.mxu0
        %s775 = scalar_lea.vmem [#allocation3], 16
        %v776 = vld [vmem:[%s775] sm:$0xff]
        %v777 = vsel %vm385, %v772, -inf
        %778 = vmax.xlane.f32.xlu0 %v777
        %v779 = vpop.xlane.xlu0 %778
        %v780 = vmax.f32 %v776, %v779
        %v781 = vsub.f32 %v776, %v780
        %v782 = vmul.f32 %v781, 1.442695
        %v783 = vpow.pop %v782
        %785 = vset.pattern.permute.xlu0 0
        %786 = vperm.xlu0 %785, %v780
        %v787 = vpop.permute.xlu0 %786
        %v789 = vsub.f32 %v772, %v787
        %v790 = vmul.f32 %v789, 1.442695
        %v791 = vpow.pop %v790
        %s792 = scalar_lea.vmem [#allocation4], 16
        %v793 = vld [vmem:[%s792] sm:$0xff]
        %v794 = vmul.f32 %v783, %v793
        %v795 = vsel %vm385, %v791, 0.0
        %796 = vadd.xlane.f32.xlu0 %v795
        %v797 = vpop.xlane.xlu0 %796
        %v798 = vadd.f32 %v794, %v797
        %799 = vst.msk [vmem:[%s792] sm:$0xff] %vm407, %v798
        %v800 = vld [vmem:[#allocation5] sm:$0xff]
        %802 = vset.pattern.permute.xlu0 0
        %803 = vperm.xlu0 %802, %v783
        %v804 = vpop.permute.xlu0 %803
        %v806 = vmul.f32 %v804, %v800
        %808 = vrot.lane.b32.xlu0 %v694, 64
        %v809 = vpop.permute.xlu0 %808
        %v812 = vsel %vm385, %v791, 0
        %814 = vmatprep.subr.mxu0 0.0
        %815 = vmatpush1.msra.mxu0 %v809
        %816 = vmatprep.subr.mxu0 0.0
        %817 = vmatpush1.msra.mxu0 0.0
        %818 = vmatprep.subr.mxu0 0.0
        %819 = vmatpush1.msra.mxu0 0.0
        %820 = vmatprep.subr.mxu0 0.0
        %821 = vmatpush1.msra.mxu0 0.0
        %822 = vmatprep.subr.mxu0 0.0
        %823 = vmatpush1.msra.mxu0 0.0
        %824 = vmatprep.subr.mxu0 0.0
        %825 = vmatpush1.msra.mxu0 0.0
        %826 = vmatprep.subr.mxu0 0.0
        %827 = vmatpush1.msra.mxu0 0.0
        %828 = vmatprep.subr.mxu0 0.0
        %829 = vmatpush1.msra.mxu0 0.0
        %830 = vmatprep.subr.mxu0 0.0
        %831 = vmatpush1.msra.mxu0 0.0
        %832 = vmatprep.subr.mxu0 0.0
        %833 = vmatpush1.msra.mxu0 0.0
        %834 = vmatprep.subr.mxu0 0.0
        %835 = vmatpush1.msra.mxu0 0.0
        %836 = vmatprep.subr.mxu0 0.0
        %837 = vmatpush1.msra.mxu0 0.0
        %838 = vmatprep.subr.mxu0 0.0
        %839 = vmatpush1.msra.mxu0 0.0
        %840 = vmatprep.subr.mxu0 0.0
        %841 = vmatpush1.msra.mxu0 0.0
        %842 = vmatprep.subr.mxu0 0.0
        %843 = vmatpush1.msra.mxu0 0.0
        %844 = vmatprep.subr.mxu0 0.0
        %845 = vmatpush1.msra.mxu0 0.0
        %846 = vmatprep.subr.mxu0 0.0
        %847 = vmatpush1.msra.mxu0 0.0
        %848 = vmatprep.subr.mxu0 0.0
        %849 = vmatpush1.msra.mxu0 0.0
        %850 = vmatprep.subr.mxu0 0.0
        %851 = vmatpush1.msra.mxu0 0.0
        %852 = vmatprep.subr.mxu0 0.0
        %853 = vmatpush1.msra.mxu0 0.0
        %854 = vmatprep.subr.mxu0 0.0
        %855 = vmatpush1.msra.mxu0 0.0
        %856 = vmatprep.subr.mxu0 0.0
        %857 = vmatpush1.msra.mxu0 0.0
        %858 = vmatprep.subr.mxu0 0.0
        %859 = vmatpush1.msra.mxu0 0.0
        %860 = vmatprep.subr.mxu0 0.0
        %861 = vmatpush1.msra.mxu0 0.0
        %862 = vmatprep.subr.mxu0 0.0
        %863 = vmatpush1.msra.mxu0 0.0
        %864 = vmatprep.subr.mxu0 0.0
        %865 = vmatpush1.msra.mxu0 0.0
        %866 = vmatprep.subr.mxu0 0.0
        %867 = vmatpush1.msra.mxu0 0.0
        %868 = vmatprep.subr.mxu0 0.0
        %869 = vmatpush1.msra.mxu0 0.0
        %870 = vmatprep.subr.mxu0 0.0
        %871 = vmatpush1.msra.mxu0 0.0
        %872 = vmatprep.subr.mxu0 0.0
        %873 = vmatpush1.msra.mxu0 0.0
        %874 = vmatprep.subr.mxu0 0.0
        %875 = vmatpush1.msra.mxu0 0.0
        %876 = vmatprep.subr.mxu0 0.0
        %877 = vmatpush1.msra.mxu0 0.0
        %878 = vmatprep.mubr.f32.mxu0 0.0
        %879 = vmatmul.mubr.f32.gmra.mrb[0].mxu0 %v812
        %v880 = vpop.f32.mrb[0].mxu0
        %v881 = vadd.f32 0.0, %v880
        %v882 = vpop.f32.mrb[0].mxu0
        %883 = vdwg.mxu0
        %885 = vrot.lane.b32.xlu0 %v881, 64
        %v886 = vpop.permute.xlu0 %885
        %v888 = vadd.f32 %v806, %v886
        %vm889 = vcmask 785920
        %890 = vst.msk [vmem:[#allocation5] sm:$0xff] %vm889, %v888
        %891 = vst.msk [vmem:[%s775] sm:$0xff] %vm407, %v780
        %v892 = vld [vmem:[#allocation2] sm:$0xff]
        %v893 = vld [vmem:[%s245] sm:$0xff]
        %v894 = vld [vmem:[%s254] sm:$0xff]
        %896 = vrot.lane.b32.xlu0 %v892, 32
        %v897 = vpop.permute.xlu0 %896
        %899 = vrot.lane.b32.xlu0 %v893, 32
        %v900 = vpop.permute.xlu0 %899
        %v901 = vsel %vm307, %v897, 0
        %v903 = vsel %vm307, %v900, 0
        %905 = vmatprep.subr.mxu0 0.0
        %906 = vmatpush1.xpose.msra.mxu0 %v903
        %907 = vmatprep.subr.mxu0 0.0
        %908 = vmatpush1.xpose.msra.mxu0 0.0
        %909 = vmatprep.subr.mxu0 0.0
        %910 = vmatpush1.xpose.msra.mxu0 0.0
        %911 = vmatprep.subr.mxu0 0.0
        %912 = vmatpush1.xpose.msra.mxu0 0.0
        %913 = vmatprep.subr.mxu0 0.0
        %914 = vmatpush1.xpose.msra.mxu0 0.0
        %915 = vmatprep.subr.mxu0 0.0
        %916 = vmatpush1.xpose.msra.mxu0 0.0
        %917 = vmatprep.subr.mxu0 0.0
        %918 = vmatpush1.xpose.msra.mxu0 0.0
        %919 = vmatprep.subr.mxu0 0.0
        %920 = vmatpush1.xpose.msra.mxu0 0.0
        %921 = vmatprep.subr.mxu0 0.0
        %922 = vmatpush1.xpose.msra.mxu0 0.0
        %923 = vmatprep.subr.mxu0 0.0
        %924 = vmatpush1.xpose.msra.mxu0 0.0
        %925 = vmatprep.subr.mxu0 0.0
        %926 = vmatpush1.xpose.msra.mxu0 0.0
        %927 = vmatprep.subr.mxu0 0.0
        %928 = vmatpush1.xpose.msra.mxu0 0.0
        %929 = vmatprep.subr.mxu0 0.0
        %930 = vmatpush1.xpose.msra.mxu0 0.0
        %931 = vmatprep.subr.mxu0 0.0
        %932 = vmatpush1.xpose.msra.mxu0 0.0
        %933 = vmatprep.subr.mxu0 0.0
        %934 = vmatpush1.xpose.msra.mxu0 0.0
        %935 = vmatprep.subr.mxu0 0.0
        %936 = vmatpush1.xpose.msra.mxu0 0.0
        %937 = vmatprep.subr.mxu0 0.0
        %938 = vmatpush1.xpose.msra.mxu0 0.0
        %939 = vmatprep.subr.mxu0 0.0
        %940 = vmatpush1.xpose.msra.mxu0 0.0
        %941 = vmatprep.subr.mxu0 0.0
        %942 = vmatpush1.xpose.msra.mxu0 0.0
        %943 = vmatprep.subr.mxu0 0.0
        %944 = vmatpush1.xpose.msra.mxu0 0.0
        %945 = vmatprep.subr.mxu0 0.0
        %946 = vmatpush1.xpose.msra.mxu0 0.0
        %947 = vmatprep.subr.mxu0 0.0
        %948 = vmatpush1.xpose.msra.mxu0 0.0
        %949 = vmatprep.subr.mxu0 0.0
        %950 = vmatpush1.xpose.msra.mxu0 0.0
        %951 = vmatprep.subr.mxu0 0.0
        %952 = vmatpush1.xpose.msra.mxu0 0.0
        %953 = vmatprep.subr.mxu0 0.0
        %954 = vmatpush1.xpose.msra.mxu0 0.0
        %955 = vmatprep.subr.mxu0 0.0
        %956 = vmatpush1.xpose.msra.mxu0 0.0
        %957 = vmatprep.subr.mxu0 0.0
        %958 = vmatpush1.xpose.msra.mxu0 0.0
        %959 = vmatprep.subr.mxu0 0.0
        %960 = vmatpush1.xpose.msra.mxu0 0.0
        %961 = vmatprep.subr.mxu0 0.0
        %962 = vmatpush1.xpose.msra.mxu0 0.0
        %963 = vmatprep.subr.mxu0 0.0
        %964 = vmatpush1.xpose.msra.mxu0 0.0
        %965 = vmatprep.subr.mxu0 0.0
        %966 = vmatpush1.xpose.msra.mxu0 0.0
        %967 = vmatprep.subr.mxu0 0.0
        %968 = vmatpush1.xpose.msra.mxu0 0.0
        %969 = vmatprep.mubr.f32.mxu0 0.0
        %970 = vmatmul.mubr.f32.gmra.mrb[0].mxu0 %v901
        %v971 = vpop.f32.mrb[0].mxu0
        %v972 = vadd.f32 0.0, %v971
        %v973 = vpop.f32.mrb[0].mxu0
        %974 = vdwg.mxu0
        %s975 = scalar_lea.vmem [#allocation3], 24
        %v976 = vld [vmem:[%s975] sm:$0xff]
        %v977 = vsel %vm385, %v972, -inf
        %978 = vmax.xlane.f32.xlu0 %v977
        %v979 = vpop.xlane.xlu0 %978
        %v980 = vmax.f32 %v976, %v979
        %v981 = vsub.f32 %v976, %v980
        %v982 = vmul.f32 %v981, 1.442695
        %v983 = vpow.pop %v982
        %985 = vset.pattern.permute.xlu0 0
        %986 = vperm.xlu0 %985, %v980
        %v987 = vpop.permute.xlu0 %986
        %v989 = vsub.f32 %v972, %v987
        %v990 = vmul.f32 %v989, 1.442695
        %v991 = vpow.pop %v990
        %s992 = scalar_lea.vmem [#allocation4], 24
        %v993 = vld [vmem:[%s992] sm:$0xff]
        %v994 = vmul.f32 %v983, %v993
        %v995 = vsel %vm385, %v991, 0.0
        %996 = vadd.xlane.f32.xlu0 %v995
        %v997 = vpop.xlane.xlu0 %996
        %v998 = vadd.f32 %v994, %v997
        %999 = vst.msk [vmem:[%s992] sm:$0xff] %vm407, %v998
        %v1000 = vld [vmem:[#allocation5] sm:$0xff]
        %1002 = vset.pattern.permute.xlu0 0
        %1003 = vperm.xlu0 %1002, %v983
        %v1004 = vpop.permute.xlu0 %1003
        %v1006 = vmul.f32 %v1004, %v1000
        %1008 = vrot.lane.b32.xlu0 %v894, 32
        %v1009 = vpop.permute.xlu0 %1008
        %v1012 = vsel %vm385, %v991, 0
        %1014 = vmatprep.subr.mxu0 0.0
        %1015 = vmatpush1.msra.mxu0 %v1009
        %1016 = vmatprep.subr.mxu0 0.0
        %1017 = vmatpush1.msra.mxu0 0.0
        %1018 = vmatprep.subr.mxu0 0.0
        %1019 = vmatpush1.msra.mxu0 0.0
        %1020 = vmatprep.subr.mxu0 0.0
        %1021 = vmatpush1.msra.mxu0 0.0
        %1022 = vmatprep.subr.mxu0 0.0
        %1023 = vmatpush1.msra.mxu0 0.0
        %1024 = vmatprep.subr.mxu0 0.0
        %1025 = vmatpush1.msra.mxu0 0.0
        %1026 = vmatprep.subr.mxu0 0.0
        %1027 = vmatpush1.msra.mxu0 0.0
        %1028 = vmatprep.subr.mxu0 0.0
        %1029 = vmatpush1.msra.mxu0 0.0
        %1030 = vmatprep.subr.mxu0 0.0
        %1031 = vmatpush1.msra.mxu0 0.0
        %1032 = vmatprep.subr.mxu0 0.0
        %1033 = vmatpush1.msra.mxu0 0.0
        %1034 = vmatprep.subr.mxu0 0.0
        %1035 = vmatpush1.msra.mxu0 0.0
        %1036 = vmatprep.subr.mxu0 0.0
        %1037 = vmatpush1.msra.mxu0 0.0
        %1038 = vmatprep.subr.mxu0 0.0
        %1039 = vmatpush1.msra.mxu0 0.0
        %1040 = vmatprep.subr.mxu0 0.0
        %1041 = vmatpush1.msra.mxu0 0.0
        %1042 = vmatprep.subr.mxu0 0.0
        %1043 = vmatpush1.msra.mxu0 0.0
        %1044 = vmatprep.subr.mxu0 0.0
        %1045 = vmatpush1.msra.mxu0 0.0
        %1046 = vmatprep.subr.mxu0 0.0
        %1047 = vmatpush1.msra.mxu0 0.0
        %1048 = vmatprep.subr.mxu0 0.0
        %1049 = vmatpush1.msra.mxu0 0.0
        %1050 = vmatprep.subr.mxu0 0.0
        %1051 = vmatpush1.msra.mxu0 0.0
        %1052 = vmatprep.subr.mxu0 0.0
        %1053 = vmatpush1.msra.mxu0 0.0
        %1054 = vmatprep.subr.mxu0 0.0
        %1055 = vmatpush1.msra.mxu0 0.0
        %1056 = vmatprep.subr.mxu0 0.0
        %1057 = vmatpush1.msra.mxu0 0.0
        %1058 = vmatprep.subr.mxu0 0.0
        %1059 = vmatpush1.msra.mxu0 0.0
        %1060 = vmatprep.subr.mxu0 0.0
        %1061 = vmatpush1.msra.mxu0 0.0
        %1062 = vmatprep.subr.mxu0 0.0
        %1063 = vmatpush1.msra.mxu0 0.0
        %1064 = vmatprep.subr.mxu0 0.0
        %1065 = vmatpush1.msra.mxu0 0.0
        %1066 = vmatprep.subr.mxu0 0.0
        %1067 = vmatpush1.msra.mxu0 0.0
        %1068 = vmatprep.subr.mxu0 0.0
        %1069 = vmatpush1.msra.mxu0 0.0
        %1070 = vmatprep.subr.mxu0 0.0
        %1071 = vmatpush1.msra.mxu0 0.0
        %1072 = vmatprep.subr.mxu0 0.0
        %1073 = vmatpush1.msra.mxu0 0.0
        %1074 = vmatprep.subr.mxu0 0.0
        %1075 = vmatpush1.msra.mxu0 0.0
        %1076 = vmatprep.subr.mxu0 0.0
        %1077 = vmatpush1.msra.mxu0 0.0
        %1078 = vmatprep.mubr.f32.mxu0 0.0
        %1079 = vmatmul.mubr.f32.gmra.mrb[0].mxu0 %v1012
        %v1080 = vpop.f32.mrb[0].mxu0
        %v1081 = vadd.f32 0.0, %v1080
        %v1082 = vpop.f32.mrb[0].mxu0
        %1083 = vdwg.mxu0
        %1085 = vrot.lane.b32.xlu0 %v1081, 96
        %v1086 = vpop.permute.xlu0 %1085
        %v1088 = vadd.f32 %v1006, %v1086
        %vm1089 = vcmask 1048320
        %1090 = vst.msk [vmem:[#allocation5] sm:$0xff] %vm1089, %v1088
        %1091 = vst.msk [vmem:[%s975] sm:$0xff] %vm407, %v980
        // Predicated region
        $region49: #{tpu_custom_call.1} parent=31 // pred_check
          %p1092 = pneg %p287
        $region50: #{tpu_custom_call.1} parent=31 // pred_check_branch
          %1094 = sbr.rel (%p1092) target = $region52
        $region51: #{tpu_custom_call.1} parent=31 // pred_region
          %v1095 = vld [vmem:[#allocation4] sm:$0xff]
          %v1096 = vrcp.pop %v1095
          %v1097 = vmul.f32 %v1095, %v1096
          %v1098 = vsub.f32 2.0, %v1097
          %v1099 = vmul.f32 %v1096, %v1098
          %v1100 = vmul.f32 %v1095, %v1099
          %v1101 = vsub.f32 2.0, %v1100
          %v1102 = vmul.f32 %v1099, %v1101
          %1104 = vset.pattern.permute.xlu0 0
          %1105 = vperm.xlu0 %1104, %v1102
          %v1106 = vpop.permute.xlu0 %1105
          %v1108 = vld [vmem:[%s592] sm:$0xff]
          %v1109 = vrcp.pop %v1108
          %v1110 = vmul.f32 %v1108, %v1109
          %v1111 = vsub.f32 2.0, %v1110
          %v1112 = vmul.f32 %v1109, %v1111
          %v1113 = vmul.f32 %v1108, %v1112
          %v1114 = vsub.f32 2.0, %v1113
          %v1115 = vmul.f32 %v1112, %v1114
          %1117 = vset.pattern.permute.xlu0 0
          %1118 = vperm.xlu0 %1117, %v1115
          %v1119 = vpop.permute.xlu0 %1118
          %v1121 = vld [vmem:[%s792] sm:$0xff]
          %v1122 = vrcp.pop %v1121
          %v1123 = vmul.f32 %v1121, %v1122
          %v1124 = vsub.f32 2.0, %v1123
          %v1125 = vmul.f32 %v1122, %v1124
          %v1126 = vmul.f32 %v1121, %v1125
          %v1127 = vsub.f32 2.0, %v1126
          %v1128 = vmul.f32 %v1125, %v1127
          %1130 = vset.pattern.permute.xlu0 0
          %1131 = vperm.xlu0 %1130, %v1128
          %v1132 = vpop.permute.xlu0 %1131
          %v1134 = vld [vmem:[%s992] sm:$0xff]
          %v1135 = vrcp.pop %v1134
          %v1136 = vmul.f32 %v1134, %v1135
          %v1137 = vsub.f32 2.0, %v1136
          %v1138 = vmul.f32 %v1135, %v1137
          %v1139 = vmul.f32 %v1134, %v1138
          %v1140 = vsub.f32 2.0, %v1139
          %v1141 = vmul.f32 %v1138, %v1140
          %1143 = vset.pattern.permute.xlu0 0
          %1144 = vperm.xlu0 %1143, %v1141
          %v1145 = vpop.permute.xlu0 %1144
          %v1147 = vsel %vm307, %v1106, %v1119
          %vm1148 = vcmask 523264
          %v1149 = vsel %vm1148, %v1147, %v1132
          %vm1150 = vcmask 785408
          %v1151 = vsel %vm1150, %v1149, %v1145
          %v1152 = vld [vmem:[#allocation5] sm:$0xff]
          %v1153 = vmul.f32 %v1152, %v1151
          %1154 = vst [vmem:[%s286] sm:$0xff] %v1153
        $region52: #{tpu_custom_call.1} parent=31 // pred_fallthru
          _
        %s1155 = sand.u32 %s136, 1
        %s1156 = scalar_lea.sflag [#allocation8], %s1155
        %s1157 = sand.u32 %s136, 1
        %s1158 = smul.addr %s1157, 8
        %s1159 = scalar_lea.vmem [#allocation12], %s1158
        // Predicated region
        $region53: #{tpu_custom_call.1} parent=31 // pred_check
          %p1160 = pneg %p146
        $region54: #{tpu_custom_call.1} parent=31 // pred_check_branch
          %1162 = sbr.rel (%p1160) target = $region56
        $region55: #{tpu_custom_call.1} parent=31 // pred_region
          %s1164 = ssub.s32 128, 128
          %1165 = vsyncadd %s1156, %s1164
          %s1166 = sadd.s32 %s29, %s28
          %s1167 = smul.addr %s1166, 128
          %s1168 = scalar_lea.hbm %s3, %s1167
          %s1170 = sshll.u32 %s1159, 4
          %s1171 = int_to_ptr.vmem [resolvable:$true] %s1170
          %1173 = dma.vmem_to_hbm [thread:$0]  %s1171, 128, %s1168, %s1156
        $region56: #{tpu_custom_call.1} parent=31 // pred_fallthru
          _
      $region32: #{tpu_custom_call.1} parent=5 // pred_fallthru
        _
      %p1174 = scmp.le.s32.totalorder 2, %s18
      // Predicated region
      $region57: #{tpu_custom_call.1} parent=5 // pred_check
        %p1175 = pneg %p1174
      $region58: #{tpu_custom_call.1} parent=5 // pred_check_branch
        %1177 = sbr.rel (%p1175) target = $region60
      $region59: #{tpu_custom_call.1} parent=5 // pred_region
        %s1178 = ssub.s32 %s18, 2
        // Predicated region
        $region61: #{tpu_custom_call.1} parent=59 // pred_check
          %p1179 = pneg %p152
        $region62: #{tpu_custom_call.1} parent=59 // pred_check_branch
          %1181 = sbr.rel (%p1179) target = $region64
        $region63: #{tpu_custom_call.1} parent=59 // pred_region
          %s1182 = sand.u32 %s137, 1
          %s1183 = scalar_lea.sflag [#allocation8], %s1182
          %s1184 = sand.u32 %s137, 1
          %s1185 = smul.addr %s1184, 8
          %s1186 = scalar_lea.vmem [#allocation12], %s1185
          %1187 = dma.done %s1183, 128
        $region64: #{tpu_custom_call.1} parent=59 // pred_fallthru
          _
      $region60: #{tpu_custom_call.1} parent=5 // pred_fallthru
        _
    $region6: #{tpu_custom_call.1} parent=1 // loop_footer
      %s22 = sadd.s32 1, %s18
    $region7: #{tpu_custom_call.1} parent=1 // loop_footer_branch
      %17 = sbr.rel target = $region3
    $region8: #{tpu_custom_call.1} parent=1 // loop_exit
      _
    %1188 = vsyncpa [#allocation7], 1
    %s1189 = scalar_lea.sflag [#allocation7], 1
    %1190 = vsyncpa %s1189, 1
    %1191 = vsyncpa [#allocation10], 1
    %s1192 = scalar_lea.sflag [#allocation10], 1
    %1193 = vsyncpa %s1192, 1
    %1194 = vsyncpa [#allocation8], 1
    %s1195 = scalar_lea.sflag [#allocation8], 1
    %1196 = vsyncpa %s1195, 1

</llo_original>
